<compile_context>
chip_gen: v7x
topology: tpu7x:2x2x1
jax: 0.10.0
libtpu: 0.0.40
codegen_flags: <defaults>
</compile_context>

<pallas_src>
import functools
import math

import jax
import jax.numpy as jnp
from jax import lax
from jax.experimental import pallas as pl
from jax.experimental.pallas import tpu as pltpu

_BN_EPS = 1e-5


# ---------------------------------------------------------------------------
# Fused conv kernel:  out_tile (Cout, Mt) = W_flat (Cout, 9*Cin) @ taps (9*Cin, Mt)
#                     + bias [+ FiLM per-sample scale/shift] [+ residual skip]
# ---------------------------------------------------------------------------
def _conv_kernel(*refs, has_film, skip_mode):
    it = iter(refs)
    taps_ref = next(it)          # (1, K, Mt)    bf16
    w_ref = next(it)             # (Cout, K)     bf16  (resident)
    b_ref = next(it)             # (Cout, 1)     f32
    if has_film:
        gamma_ref = next(it)     # (1, Cout, 1)  f32
        beta_ref = next(it)      # (1, Cout, 1)  f32
    if skip_mode != "none":
        xs_ref = next(it)        # (1, Cs, Mt)   f32 (identity) / bf16 (conv)
    if skip_mode == "conv":
        ws_ref = next(it)        # (Cout, Cs)    bf16
        bs_ref = next(it)        # (Cout, 1)     f32
    o_ref = next(it)             # (1, Cout, Mt) f32

    # Single MXU matmul over the fused contraction K = 9 * Cin.
    acc = jnp.dot(w_ref[...], taps_ref[0], preferred_element_type=jnp.float32)
    acc = acc + b_ref[...]                        # bias fused into epilogue
    if has_film:
        acc = acc * gamma_ref[0] + beta_ref[0]    # per-sample FiLM
    if skip_mode == "identity":
        acc = acc + xs_ref[0]
    elif skip_mode == "conv":
        acc = acc + jnp.dot(ws_ref[...], xs_ref[0],
                            preferred_element_type=jnp.float32) + bs_ref[...]
    o_ref[0] = acc.astype(o_ref.dtype)


def _pick_mt(p):
    # Largest lane-dense pixel tile that evenly divides P (fallback: full P).
    for cand in (512, 384, 256, 128):
        if p % cand == 0:
            return cand
    return p


def conv3x3_pallas(g, w, b, *, gamma=None, beta=None,
                   skip_x=None, skip_w=None, skip_b=None):
    """3x3 same-padding conv (stride 1) on NCHW `g`, fused bias/FiLM/skip."""
    N, Cin, H, W = g.shape
    Cout = w.shape[0]
    P = H * W
    K = 9 * Cin
    mt = _pick_mt(P)

    # im2col glue, channel-major so K order matches weight.reshape(Cout, Cin*9).
    # TODO(synk): extract the 9 shifted taps in-kernel from a VMEM-resident
    #             padded slab to avoid materializing the 9x-duplicated taps.
    gp = jnp.pad(g, ((0, 0), (0, 0), (1, 1), (1, 1)))
    taps = jnp.stack(
        [gp[:, :, ky:ky + H, kx:kx + W] for ky in range(3) for kx in range(3)],
        axis=2,
    )                                              # (N, Cin, 9, H, W)
    taps = taps.reshape(N, K, P).astype(jnp.bfloat16)
    w_flat = w.reshape(Cout, K).astype(jnp.bfloat16)
    b2 = b.reshape(Cout, 1).astype(jnp.float32)

    has_film = gamma is not None
    if skip_x is None:
        skip_mode = "none"
    elif skip_w is None:
        skip_mode = "identity"
    else:
        skip_mode = "conv"

    inputs = [taps, w_flat, b2]
    in_specs = [
        pl.BlockSpec((1, K, mt), lambda n, m: (n, 0, m)),
        pl.BlockSpec((Cout, K), lambda n, m: (0, 0)),
        pl.BlockSpec((Cout, 1), lambda n, m: (0, 0)),
    ]
    if has_film:
        inputs += [gamma.reshape(N, Cout, 1).astype(jnp.float32),
                   beta.reshape(N, Cout, 1).astype(jnp.float32)]
        in_specs += [pl.BlockSpec((1, Cout, 1), lambda n, m: (n, 0, 0)),
                     pl.BlockSpec((1, Cout, 1), lambda n, m: (n, 0, 0))]
    if skip_mode != "none":
        Cs = skip_x.shape[1]
        xs = skip_x.reshape(N, Cs, P)
        xs = xs.astype(jnp.float32 if skip_mode == "identity" else jnp.bfloat16)
        inputs += [xs]
        in_specs += [pl.BlockSpec((1, Cs, mt), lambda n, m: (n, 0, m))]
        if skip_mode == "conv":
            inputs += [skip_w.reshape(Cout, Cs).astype(jnp.bfloat16),
                       skip_b.reshape(Cout, 1).astype(jnp.float32)]
            in_specs += [pl.BlockSpec((Cout, Cs), lambda n, m: (0, 0)),
                         pl.BlockSpec((Cout, 1), lambda n, m: (0, 0))]

    kernel = functools.partial(_conv_kernel, has_film=has_film,
                               skip_mode=skip_mode)

    out = pl.pallas_call(
        kernel,
        out_shape=jax.ShapeDtypeStruct((N, Cout, P), jnp.float32),
        grid_spec=pltpu.PrefetchScalarGridSpec(
            num_scalar_prefetch=0,
            grid=(N, P // mt),
            in_specs=in_specs,
            out_specs=pl.BlockSpec((1, Cout, mt), lambda n, m: (n, 0, m)),
        ),
        compiler_params=pltpu.CompilerParams(
            dimension_semantics=("parallel", "parallel"),
        ),
    )(*inputs)
    return out.reshape(N, Cout, H, W)


# ---------------------------------------------------------------------------
# ResBlock / SequentialWithT (functional, NCHW)
# ---------------------------------------------------------------------------
def _silu(z):
    return z * jax.nn.sigmoid(z)


def _bn_scale_shift(x, weight, bias):
    # Training-mode BatchNorm2d forward: batch statistics over (N, H, W).
    mean = jnp.mean(x, axis=(0, 2, 3))
    var = jnp.var(x, axis=(0, 2, 3))          # biased, as PyTorch normalizes
    a = weight / jnp.sqrt(var + _BN_EPS)
    return a, bias - mean * a


def resblock_forward(p, x, t_embed):
    N, Cin, H, W = x.shape
    Cout = p["conv1_w"].shape[0]

    a1, b1 = _bn_scale_shift(x, p["norm1_w"], p["norm1_b"])
    g1 = _silu(x * a1[None, :, None, None] + b1[None, :, None, None])

    gamma = beta = None
    if p.get("film_w") is not None:
        fb = t_embed @ p["film_w"].T + p["film_b"]     # tiny Linear, left to XLA
        gamma, beta = fb[:, :Cout], fb[:, Cout:]

    # conv1 + bias + FiLM: one Pallas call.
    h = conv3x3_pallas(g1, p["conv1_w"], p["conv1_b"], gamma=gamma, beta=beta)

    a2, b2 = _bn_scale_shift(h, p["norm2_w"], p["norm2_b"])
    g2 = _silu(h * a2[None, :, None, None] + b2[None, :, None, None])

    # conv2 + bias + residual skip (identity or fused 1x1 conv): one Pallas call.
    if Cin == Cout:
        return conv3x3_pallas(g2, p["conv2_w"], p["conv2_b"], skip_x=x)
    return conv3x3_pallas(g2, p["conv2_w"], p["conv2_b"], skip_x=x,
                          skip_w=p["skip_w"], skip_b=p["skip_b"])


def sequential_with_t_forward(layer_params, x, t_embed, cond_feat=None):
    # TODO(synk): SpatialTransformer layers are not implemented (class not
    #             provided in the spec); only ResBlock layers are supported.
    for p in layer_params:
        x = resblock_forward(p, x, t_embed)
    return x


# ---------------------------------------------------------------------------
# Pure-JAX f32 reference (lax.conv) for validation
# ---------------------------------------------------------------------------
def _resblock_ref(p, x, t_embed):
    def bn(z, w, b):
        mean = jnp.mean(z, axis=(0, 2, 3), keepdims=True)
        var = jnp.var(z, axis=(0, 2, 3), keepdims=True)
        return ((z - mean) / jnp.sqrt(var + _BN_EPS)
                * w[None, :, None, None] + b[None, :, None, None])

    def conv(z, w, b, pad):
        y = lax.conv_general_dilated(
            z, w, window_strides=(1, 1), padding=((pad, pad), (pad, pad)),
            dimension_numbers=("NCHW", "OIHW", "NCHW"))
        return y + b[None, :, None, None]

    Cin, Cout = x.shape[1], p["conv1_w"].shape[0]
    h = conv(_silu(bn(x, p["norm1_w"], p["norm1_b"])),
             p["conv1_w"], p["conv1_b"], 1)
    if p.get("film_w") is not None:
        fb = t_embed @ p["film_w"].T + p["film_b"]
        gamma, beta = fb[:, :Cout], fb[:, Cout:]
        h = h * gamma[:, :, None, None] + beta[:, :, None, None]
    h = conv(_silu(bn(h, p["norm2_w"], p["norm2_b"])),
             p["conv2_w"], p["conv2_b"], 1)
    skip = x if Cin == Cout else conv(x, p["skip_w"], p["skip_b"], 0)
    return h + skip


def _reference(layer_params, x, t_embed):
    for p in layer_params:
        x = _resblock_ref(p, x, t_embed)
    return x


def _init_resblock(key, cin, cout, tdim, use_film=True):
    ks = jax.random.split(key, 12)

    def u(k, shape, bound):
        return jax.random.uniform(k, shape, jnp.float32, -bound, bound)

    p = {}
    p["norm1_w"] = 1.0 + 0.5 * jax.random.normal(ks[0], (cin,), jnp.float32)
    p["norm1_b"] = 0.1 * jax.random.normal(ks[1], (cin,), jnp.float32)
    bnd = 1.0 / math.sqrt(cin * 9)
    p["conv1_w"] = u(ks[2], (cout, cin, 3, 3), bnd)
    p["conv1_b"] = u(ks[3], (cout,), bnd)
    p["norm2_w"] = 1.0 + 0.5 * jax.random.normal(ks[4], (cout,), jnp.float32)
    p["norm2_b"] = 0.1 * jax.random.normal(ks[5], (cout,), jnp.float32)
    bnd = 1.0 / math.sqrt(cout * 9)
    p["conv2_w"] = u(ks[6], (cout, cout, 3, 3), bnd)
    p["conv2_b"] = u(ks[7], (cout,), bnd)
    if cin != cout:
        bnd = 1.0 / math.sqrt(cin)
        p["skip_w"] = u(ks[8], (cout, cin, 1, 1), bnd)
        p["skip_b"] = u(ks[9], (cout,), bnd)
    if use_film:
        bnd = 1.0 / math.sqrt(tdim)
        p["film_w"] = u(ks[10], (2 * cout, tdim), bnd)
        p["film_b"] = u(ks[11], (2 * cout,), bnd)
    return p


if __name__ == "__main__":
    key = jax.random.PRNGKey(0)
    kx, kt, k1, k2 = jax.random.split(key, 4)

    N, C, H, W = 2, 4, 16, 16
    TDIM = 32
    x = jax.random.normal(kx, (N, C, H, W), dtype=jnp.float32)
    t_embed = jax.random.normal(kt, (N, TDIM), dtype=jnp.float32)

    # SequentialWithT(ResBlock(4 -> 8, film), ResBlock(8 -> 8, film))
    layer_params = [
        _init_resblock(k1, C, 8, TDIM, use_film=True),
        _init_resblock(k2, 8, 8, TDIM, use_film=True),
    ]

    out = jax.jit(sequential_with_t_forward)(layer_params, x, t_embed)
    out = jax.block_until_ready(out)

    ref = jax.block_until_ready(_reference(layer_params, x, t_embed))
    assert out.shape == (N, 8, H, W), out.shape
    # bf16 matmul inputs with f32 accumulation vs a pure-f32 reference.
    assert jnp.allclose(out, ref, atol=5e-2, rtol=5e-2), float(
        jnp.max(jnp.abs(out - ref)))
    print("KERNEL_OK")
</pallas_src>

<mosaic_0001>
module attributes {stable_mosaic.version = 11 : i64} {
  func.func @_conv_kernel(%arg0: i32, %arg1: i32, %arg2: memref<1x36x256xbf16, #tpu.memory_space<vmem>>, %arg3: memref<8x36xbf16, #tpu.memory_space<vmem>>, %arg4: memref<8x1xf32, #tpu.memory_space<vmem>>, %arg5: memref<1x8x1xf32, #tpu.memory_space<vmem>>, %arg6: memref<1x8x1xf32, #tpu.memory_space<vmem>>, %arg7: memref<1x8x256xf32, #tpu.memory_space<vmem>>) attributes {dimension_semantics = [#tpu.dimension_semantics<parallel>, #tpu.dimension_semantics<parallel>], iteration_bounds = array<i64: 2, 1>, scalar_prefetch = 0 : i64, scratch_operands = 0 : i64, tpu.core_type = #tpu.core_type<tc>, window_params = [{transform_indices = @transform_0, window_bounds = array<i64: 1, 36, 256>}, {pipeline_mode = #tpu.pipeline_mode<synchronous>, transform_indices = @transform_1, window_bounds = array<i64: 8, 36>}, {pipeline_mode = #tpu.pipeline_mode<synchronous>, transform_indices = @transform_2, window_bounds = array<i64: 8, 1>}, {transform_indices = @transform_3, window_bounds = array<i64: 1, 8, 1>}, {transform_indices = @transform_4, window_bounds = array<i64: 1, 8, 1>}, {transform_indices = @transform_5, window_bounds = array<i64: 1, 8, 256>}]} {
    %c0 = arith.constant 0 : index
    %c0_0 = arith.constant 0 : index
    %0 = vector.load %arg3[%c0, %c0_0] : memref<8x36xbf16, #tpu.memory_space<vmem>>, vector<8x36xbf16>
    %c0_1 = arith.constant 0 : index
    %c0_2 = arith.constant 0 : index
    %c0_3 = arith.constant 0 : index
    %1 = vector.load %arg2[%c0_1, %c0_2, %c0_3] : memref<1x36x256xbf16, #tpu.memory_space<vmem>>, vector<1x36x256xbf16>
    %2 = vector.shape_cast %1 : vector<1x36x256xbf16> to vector<36x256xbf16>
    %cst = arith.constant dense<0.000000e+00> : vector<8x256xf32>
    %3 = tpu.matmul %0, %2, %cst {dimension_numbers = #tpu.dot_dimension_numbers<[1], [0], [0], [1], [0, 0, 1, 1], [], []>} : vector<8x36xbf16>, vector<36x256xbf16>, vector<8x256xf32> -> vector<8x256xf32>
    %c0_4 = arith.constant 0 : index
    %c0_5 = arith.constant 0 : index
    %4 = vector.load %arg4[%c0_4, %c0_5] : memref<8x1xf32, #tpu.memory_space<vmem>>, vector<8x1xf32>
    %5 = vector.broadcast %4 : vector<8x1xf32> to vector<8x256xf32>
    %6 = arith.addf %3, %5 : vector<8x256xf32>
    %c0_6 = arith.constant 0 : index
    %c0_7 = arith.constant 0 : index
    %c0_8 = arith.constant 0 : index
    %7 = vector.load %arg5[%c0_6, %c0_7, %c0_8] : memref<1x8x1xf32, #tpu.memory_space<vmem>>, vector<1x8x1xf32>
    %8 = vector.shape_cast %7 : vector<1x8x1xf32> to vector<8x1xf32>
    %9 = vector.broadcast %8 : vector<8x1xf32> to vector<8x256xf32>
    %10 = arith.mulf %6, %9 : vector<8x256xf32>
    %c0_9 = arith.constant 0 : index
    %c0_10 = arith.constant 0 : index
    %c0_11 = arith.constant 0 : index
    %11 = vector.load %arg6[%c0_9, %c0_10, %c0_11] : memref<1x8x1xf32, #tpu.memory_space<vmem>>, vector<1x8x1xf32>
    %12 = vector.shape_cast %11 : vector<1x8x1xf32> to vector<8x1xf32>
    %13 = vector.broadcast %12 : vector<8x1xf32> to vector<8x256xf32>
    %14 = arith.addf %10, %13 : vector<8x256xf32>
    %c0_12 = arith.constant 0 : index
    %c0_13 = arith.constant 0 : index
    %c0_14 = arith.constant 0 : index
    %15 = vector.load %arg7[%c0_12, %c0_13, %c0_14] : memref<1x8x256xf32, #tpu.memory_space<vmem>>, vector<1x8x256xf32>
    %16 = vector.shape_cast %15 : vector<1x8x256xf32> to vector<8x256xf32>
    %17 = vector.shape_cast %14 : vector<8x256xf32> to vector<1x8x256xf32>
    tpu.vector_store %arg7[%c0_12, %c0_13, %c0_14], %17 {strides = array<i32>} : memref<1x8x256xf32, #tpu.memory_space<vmem>>, vector<1x8x256xf32>,
    return
  }
  func.func @transform_0(%arg0: i32, %arg1: i32) -> (i32, i32, i32) {
    %c0_i32 = arith.constant 0 : i32
    %c0_i32_0 = arith.constant 0 : i32
    return %arg0, %c0_i32, %arg1 : i32, i32, i32
  }
  func.func @transform_1(%arg0: i32, %arg1: i32) -> (i32, i32) {
    %c0_i32 = arith.constant 0 : i32
    %c0_i32_0 = arith.constant 0 : i32
    %c0_i32_1 = arith.constant 0 : i32
    return %c0_i32, %c0_i32_0 : i32, i32
  }
  func.func @transform_2(%arg0: i32, %arg1: i32) -> (i32, i32) {
    %c0_i32 = arith.constant 0 : i32
    %c0_i32_0 = arith.constant 0 : i32
    %c0_i32_1 = arith.constant 0 : i32
    return %c0_i32, %c0_i32_0 : i32, i32
  }
  func.func @transform_3(%arg0: i32, %arg1: i32) -> (i32, i32, i32) {
    %c0_i32 = arith.constant 0 : i32
    %c0_i32_0 = arith.constant 0 : i32
    %c0_i32_1 = arith.constant 0 : i32
    return %arg0, %c0_i32, %c0_i32_0 : i32, i32, i32
  }
  func.func @transform_4(%arg0: i32, %arg1: i32) -> (i32, i32, i32) {
    %c0_i32 = arith.constant 0 : i32
    %c0_i32_0 = arith.constant 0 : i32
    %c0_i32_1 = arith.constant 0 : i32
    return %arg0, %c0_i32, %c0_i32_0 : i32, i32, i32
  }
  func.func @transform_5(%arg0: i32, %arg1: i32) -> (i32, i32, i32) {
    %c0_i32 = arith.constant 0 : i32
    %c0_i32_0 = arith.constant 0 : i32
    return %arg0, %c0_i32, %arg1 : i32, i32, i32
  }
}

module attributes {stable_mosaic.version = 11 : i64} {
  func.func @_conv_kernel(%arg0: i32, %arg1: i32, %arg2: memref<1x72x256xbf16, #tpu.memory_space<vmem>>, %arg3: memref<8x72xbf16, #tpu.memory_space<vmem>>, %arg4: memref<8x1xf32, #tpu.memory_space<vmem>>, %arg5: memref<1x4x256xbf16, #tpu.memory_space<vmem>>, %arg6: memref<8x4xbf16, #tpu.memory_space<vmem>>, %arg7: memref<8x1xf32, #tpu.memory_space<vmem>>, %arg8: memref<1x8x256xf32, #tpu.memory_space<vmem>>) attributes {dimension_semantics = [#tpu.dimension_semantics<parallel>, #tpu.dimension_semantics<parallel>], iteration_bounds = array<i64: 2, 1>, scalar_prefetch = 0 : i64, scratch_operands = 0 : i64, tpu.core_type = #tpu.core_type<tc>, window_params = [{transform_indices = @transform_0, window_bounds = array<i64: 1, 72, 256>}, {pipeline_mode = #tpu.pipeline_mode<synchronous>, transform_indices = @transform_1, window_bounds = array<i64: 8, 72>}, {pipeline_mode = #tpu.pipeline_mode<synchronous>, transform_indices = @transform_2, window_bounds = array<i64: 8, 1>}, {transform_indices = @transform_3, window_bounds = array<i64: 1, 4, 256>}, {pipeline_mode = #tpu.pipeline_mode<synchronous>, transform_indices = @transform_4, window_bounds = array<i64: 8, 4>}, {pipeline_mode = #tpu.pipeline_mode<synchronous>, transform_indices = @transform_5, window_bounds = array<i64: 8, 1>}, {transform_indices = @transform_6, window_bounds = array<i64: 1, 8, 256>}]} {
    %c0 = arith.constant 0 : index
    %c0_0 = arith.constant 0 : index
    %0 = vector.load %arg3[%c0, %c0_0] : memref<8x72xbf16, #tpu.memory_space<vmem>>, vector<8x72xbf16>
    %c0_1 = arith.constant 0 : index
    %c0_2 = arith.constant 0 : index
    %c0_3 = arith.constant 0 : index
    %1 = vector.load %arg2[%c0_1, %c0_2, %c0_3] : memref<1x72x256xbf16, #tpu.memory_space<vmem>>, vector<1x72x256xbf16>
    %2 = vector.shape_cast %1 : vector<1x72x256xbf16> to vector<72x256xbf16>
    %cst = arith.constant dense<0.000000e+00> : vector<8x256xf32>
    %3 = tpu.matmul %0, %2, %cst {dimension_numbers = #tpu.dot_dimension_numbers<[1], [0], [0], [1], [0, 0, 1, 1], [], []>} : vector<8x72xbf16>, vector<72x256xbf16>, vector<8x256xf32> -> vector<8x256xf32>
    %c0_4 = arith.constant 0 : index
    %c0_5 = arith.constant 0 : index
    %4 = vector.load %arg4[%c0_4, %c0_5] : memref<8x1xf32, #tpu.memory_space<vmem>>, vector<8x1xf32>
    %5 = vector.broadcast %4 : vector<8x1xf32> to vector<8x256xf32>
    %6 = arith.addf %3, %5 : vector<8x256xf32>
    %c0_6 = arith.constant 0 : index
    %c0_7 = arith.constant 0 : index
    %7 = vector.load %arg6[%c0_6, %c0_7] : memref<8x4xbf16, #tpu.memory_space<vmem>>, vector<8x4xbf16>
    %c0_8 = arith.constant 0 : index
    %c0_9 = arith.constant 0 : index
    %c0_10 = arith.constant 0 : index
    %8 = vector.load %arg5[%c0_8, %c0_9, %c0_10] : memref<1x4x256xbf16, #tpu.memory_space<vmem>>, vector<1x4x256xbf16>
    %9 = vector.shape_cast %8 : vector<1x4x256xbf16> to vector<4x256xbf16>
    %cst_11 = arith.constant dense<0.000000e+00> : vector<8x256xf32>
    %10 = tpu.matmul %7, %9, %cst_11 {dimension_numbers = #tpu.dot_dimension_numbers<[1], [0], [0], [1], [0, 0, 1, 1], [], []>} : vector<8x4xbf16>, vector<4x256xbf16>, vector<8x256xf32> -> vector<8x256xf32>
    %11 = arith.addf %6, %10 : vector<8x256xf32>
    %c0_12 = arith.constant 0 : index
    %c0_13 = arith.constant 0 : index
    %12 = vector.load %arg7[%c0_12, %c0_13] : memref<8x1xf32, #tpu.memory_space<vmem>>, vector<8x1xf32>
    %13 = vector.broadcast %12 : vector<8x1xf32> to vector<8x256xf32>
    %14 = arith.addf %11, %13 : vector<8x256xf32>
    %c0_14 = arith.constant 0 : index
    %c0_15 = arith.constant 0 : index
    %c0_16 = arith.constant 0 : index
    %15 = vector.load %arg8[%c0_14, %c0_15, %c0_16] : memref<1x8x256xf32, #tpu.memory_space<vmem>>, vector<1x8x256xf32>
    %16 = vector.shape_cast %15 : vector<1x8x256xf32> to vector<8x256xf32>
    %17 = vector.shape_cast %14 : vector<8x256xf32> to vector<1x8x256xf32>
    tpu.vector_store %arg8[%c0_14, %c0_15, %c0_16], %17 {strides = array<i32>} : memref<1x8x256xf32, #tpu.memory_space<vmem>>, vector<1x8x256xf32>,
    return
  }
  func.func @transform_0(%arg0: i32, %arg1: i32) -> (i32, i32, i32) {
    %c0_i32 = arith.constant 0 : i32
    %c0_i32_0 = arith.constant 0 : i32
    return %arg0, %c0_i32, %arg1 : i32, i32, i32
  }
  func.func @transform_1(%arg0: i32, %arg1: i32) -> (i32, i32) {
    %c0_i32 = arith.constant 0 : i32
    %c0_i32_0 = arith.constant 0 : i32
    %c0_i32_1 = arith.constant 0 : i32
    return %c0_i32, %c0_i32_0 : i32, i32
  }
  func.func @transform_2(%arg0: i32, %arg1: i32) -> (i32, i32) {
    %c0_i32 = arith.constant 0 : i32
    %c0_i32_0 = arith.constant 0 : i32
    %c0_i32_1 = arith.constant 0 : i32
    return %c0_i32, %c0_i32_0 : i32, i32
  }
  func.func @transform_3(%arg0: i32, %arg1: i32) -> (i32, i32, i32) {
    %c0_i32 = arith.constant 0 : i32
    %c0_i32_0 = arith.constant 0 : i32
    return %arg0, %c0_i32, %arg1 : i32, i32, i32
  }
  func.func @transform_4(%arg0: i32, %arg1: i32) -> (i32, i32) {
    %c0_i32 = arith.constant 0 : i32
    %c0_i32_0 = arith.constant 0 : i32
    %c0_i32_1 = arith.constant 0 : i32
    return %c0_i32, %c0_i32_0 : i32, i32
  }
  func.func @transform_5(%arg0: i32, %arg1: i32) -> (i32, i32) {
    %c0_i32 = arith.constant 0 : i32
    %c0_i32_0 = arith.constant 0 : i32
    %c0_i32_1 = arith.constant 0 : i32
    return %c0_i32, %c0_i32_0 : i32, i32
  }
  func.func @transform_6(%arg0: i32, %arg1: i32) -> (i32, i32, i32) {
    %c0_i32 = arith.constant 0 : i32
    %c0_i32_0 = arith.constant 0 : i32
    return %arg0, %c0_i32, %arg1 : i32, i32, i32
  }
}

module attributes {stable_mosaic.version = 11 : i64} {
  func.func @_conv_kernel(%arg0: i32, %arg1: i32, %arg2: memref<1x72x256xbf16, #tpu.memory_space<vmem>>, %arg3: memref<8x72xbf16, #tpu.memory_space<vmem>>, %arg4: memref<8x1xf32, #tpu.memory_space<vmem>>, %arg5: memref<1x8x1xf32, #tpu.memory_space<vmem>>, %arg6: memref<1x8x1xf32, #tpu.memory_space<vmem>>, %arg7: memref<1x8x256xf32, #tpu.memory_space<vmem>>) attributes {dimension_semantics = [#tpu.dimension_semantics<parallel>, #tpu.dimension_semantics<parallel>], iteration_bounds = array<i64: 2, 1>, scalar_prefetch = 0 : i64, scratch_operands = 0 : i64, tpu.core_type = #tpu.core_type<tc>, window_params = [{transform_indices = @transform_0, window_bounds = array<i64: 1, 72, 256>}, {pipeline_mode = #tpu.pipeline_mode<synchronous>, transform_indices = @transform_1, window_bounds = array<i64: 8, 72>}, {pipeline_mode = #tpu.pipeline_mode<synchronous>, transform_indices = @transform_2, window_bounds = array<i64: 8, 1>}, {transform_indices = @transform_3, window_bounds = array<i64: 1, 8, 1>}, {transform_indices = @transform_4, window_bounds = array<i64: 1, 8, 1>}, {transform_indices = @transform_5, window_bounds = array<i64: 1, 8, 256>}]} {
    %c0 = arith.constant 0 : index
    %c0_0 = arith.constant 0 : index
    %0 = vector.load %arg3[%c0, %c0_0] : memref<8x72xbf16, #tpu.memory_space<vmem>>, vector<8x72xbf16>
    %c0_1 = arith.constant 0 : index
    %c0_2 = arith.constant 0 : index
    %c0_3 = arith.constant 0 : index
    %1 = vector.load %arg2[%c0_1, %c0_2, %c0_3] : memref<1x72x256xbf16, #tpu.memory_space<vmem>>, vector<1x72x256xbf16>
    %2 = vector.shape_cast %1 : vector<1x72x256xbf16> to vector<72x256xbf16>
    %cst = arith.constant dense<0.000000e+00> : vector<8x256xf32>
    %3 = tpu.matmul %0, %2, %cst {dimension_numbers = #tpu.dot_dimension_numbers<[1], [0], [0], [1], [0, 0, 1, 1], [], []>} : vector<8x72xbf16>, vector<72x256xbf16>, vector<8x256xf32> -> vector<8x256xf32>
    %c0_4 = arith.constant 0 : index
    %c0_5 = arith.constant 0 : index
    %4 = vector.load %arg4[%c0_4, %c0_5] : memref<8x1xf32, #tpu.memory_space<vmem>>, vector<8x1xf32>
    %5 = vector.broadcast %4 : vector<8x1xf32> to vector<8x256xf32>
    %6 = arith.addf %3, %5 : vector<8x256xf32>
    %c0_6 = arith.constant 0 : index
    %c0_7 = arith.constant 0 : index
    %c0_8 = arith.constant 0 : index
    %7 = vector.load %arg5[%c0_6, %c0_7, %c0_8] : memref<1x8x1xf32, #tpu.memory_space<vmem>>, vector<1x8x1xf32>
    %8 = vector.shape_cast %7 : vector<1x8x1xf32> to vector<8x1xf32>
    %9 = vector.broadcast %8 : vector<8x1xf32> to vector<8x256xf32>
    %10 = arith.mulf %6, %9 : vector<8x256xf32>
    %c0_9 = arith.constant 0 : index
    %c0_10 = arith.constant 0 : index
    %c0_11 = arith.constant 0 : index
    %11 = vector.load %arg6[%c0_9, %c0_10, %c0_11] : memref<1x8x1xf32, #tpu.memory_space<vmem>>, vector<1x8x1xf32>
    %12 = vector.shape_cast %11 : vector<1x8x1xf32> to vector<8x1xf32>
    %13 = vector.broadcast %12 : vector<8x1xf32> to vector<8x256xf32>
    %14 = arith.addf %10, %13 : vector<8x256xf32>
    %c0_12 = arith.constant 0 : index
    %c0_13 = arith.constant 0 : index
    %c0_14 = arith.constant 0 : index
    %15 = vector.load %arg7[%c0_12, %c0_13, %c0_14] : memref<1x8x256xf32, #tpu.memory_space<vmem>>, vector<1x8x256xf32>
    %16 = vector.shape_cast %15 : vector<1x8x256xf32> to vector<8x256xf32>
    %17 = vector.shape_cast %14 : vector<8x256xf32> to vector<1x8x256xf32>
    tpu.vector_store %arg7[%c0_12, %c0_13, %c0_14], %17 {strides = array<i32>} : memref<1x8x256xf32, #tpu.memory_space<vmem>>, vector<1x8x256xf32>,
    return
  }
  func.func @transform_0(%arg0: i32, %arg1: i32) -> (i32, i32, i32) {
    %c0_i32 = arith.constant 0 : i32
    %c0_i32_0 = arith.constant 0 : i32
    return %arg0, %c0_i32, %arg1 : i32, i32, i32
  }
  func.func @transform_1(%arg0: i32, %arg1: i32) -> (i32, i32) {
    %c0_i32 = arith.constant 0 : i32
    %c0_i32_0 = arith.constant 0 : i32
    %c0_i32_1 = arith.constant 0 : i32
    return %c0_i32, %c0_i32_0 : i32, i32
  }
  func.func @transform_2(%arg0: i32, %arg1: i32) -> (i32, i32) {
    %c0_i32 = arith.constant 0 : i32
    %c0_i32_0 = arith.constant 0 : i32
    %c0_i32_1 = arith.constant 0 : i32
    return %c0_i32, %c0_i32_0 : i32, i32
  }
  func.func @transform_3(%arg0: i32, %arg1: i32) -> (i32, i32, i32) {
    %c0_i32 = arith.constant 0 : i32
    %c0_i32_0 = arith.constant 0 : i32
    %c0_i32_1 = arith.constant 0 : i32
    return %arg0, %c0_i32, %c0_i32_0 : i32, i32, i32
  }
  func.func @transform_4(%arg0: i32, %arg1: i32) -> (i32, i32, i32) {
    %c0_i32 = arith.constant 0 : i32
    %c0_i32_0 = arith.constant 0 : i32
    %c0_i32_1 = arith.constant 0 : i32
    return %arg0, %c0_i32, %c0_i32_0 : i32, i32, i32
  }
  func.func @transform_5(%arg0: i32, %arg1: i32) -> (i32, i32, i32) {
    %c0_i32 = arith.constant 0 : i32
    %c0_i32_0 = arith.constant 0 : i32
    return %arg0, %c0_i32, %arg1 : i32, i32, i32
  }
}

module attributes {stable_mosaic.version = 11 : i64} {
  func.func @_conv_kernel(%arg0: i32, %arg1: i32, %arg2: memref<1x72x256xbf16, #tpu.memory_space<vmem>>, %arg3: memref<8x72xbf16, #tpu.memory_space<vmem>>, %arg4: memref<8x1xf32, #tpu.memory_space<vmem>>, %arg5: memref<1x8x256xf32, #tpu.memory_space<vmem>>, %arg6: memref<1x8x256xf32, #tpu.memory_space<vmem>>) attributes {dimension_semantics = [#tpu.dimension_semantics<parallel>, #tpu.dimension_semantics<parallel>], iteration_bounds = array<i64: 2, 1>, scalar_prefetch = 0 : i64, scratch_operands = 0 : i64, tpu.core_type = #tpu.core_type<tc>, window_params = [{transform_indices = @transform_0, window_bounds = array<i64: 1, 72, 256>}, {pipeline_mode = #tpu.pipeline_mode<synchronous>, transform_indices = @transform_1, window_bounds = array<i64: 8, 72>}, {pipeline_mode = #tpu.pipeline_mode<synchronous>, transform_indices = @transform_2, window_bounds = array<i64: 8, 1>}, {transform_indices = @transform_3, window_bounds = array<i64: 1, 8, 256>}, {transform_indices = @transform_4, window_bounds = array<i64: 1, 8, 256>}]} {
    %c0 = arith.constant 0 : index
    %c0_0 = arith.constant 0 : index
    %0 = vector.load %arg3[%c0, %c0_0] : memref<8x72xbf16, #tpu.memory_space<vmem>>, vector<8x72xbf16>
    %c0_1 = arith.constant 0 : index
    %c0_2 = arith.constant 0 : index
    %c0_3 = arith.constant 0 : index
    %1 = vector.load %arg2[%c0_1, %c0_2, %c0_3] : memref<1x72x256xbf16, #tpu.memory_space<vmem>>, vector<1x72x256xbf16>
    %2 = vector.shape_cast %1 : vector<1x72x256xbf16> to vector<72x256xbf16>
    %cst = arith.constant dense<0.000000e+00> : vector<8x256xf32>
    %3 = tpu.matmul %0, %2, %cst {dimension_numbers = #tpu.dot_dimension_numbers<[1], [0], [0], [1], [0, 0, 1, 1], [], []>} : vector<8x72xbf16>, vector<72x256xbf16>, vector<8x256xf32> -> vector<8x256xf32>
    %c0_4 = arith.constant 0 : index
    %c0_5 = arith.constant 0 : index
    %4 = vector.load %arg4[%c0_4, %c0_5] : memref<8x1xf32, #tpu.memory_space<vmem>>, vector<8x1xf32>
    %5 = vector.broadcast %4 : vector<8x1xf32> to vector<8x256xf32>
    %6 = arith.addf %3, %5 : vector<8x256xf32>
    %c0_6 = arith.constant 0 : index
    %c0_7 = arith.constant 0 : index
    %c0_8 = arith.constant 0 : index
    %7 = vector.load %arg5[%c0_6, %c0_7, %c0_8] : memref<1x8x256xf32, #tpu.memory_space<vmem>>, vector<1x8x256xf32>
    %8 = vector.shape_cast %7 : vector<1x8x256xf32> to vector<8x256xf32>
    %9 = arith.addf %6, %8 : vector<8x256xf32>
    %c0_9 = arith.constant 0 : index
    %c0_10 = arith.constant 0 : index
    %c0_11 = arith.constant 0 : index
    %10 = vector.load %arg6[%c0_9, %c0_10, %c0_11] : memref<1x8x256xf32, #tpu.memory_space<vmem>>, vector<1x8x256xf32>
    %11 = vector.shape_cast %10 : vector<1x8x256xf32> to vector<8x256xf32>
    %12 = vector.shape_cast %9 : vector<8x256xf32> to vector<1x8x256xf32>
    tpu.vector_store %arg6[%c0_9, %c0_10, %c0_11], %12 {strides = array<i32>} : memref<1x8x256xf32, #tpu.memory_space<vmem>>, vector<1x8x256xf32>,
    return
  }
  func.func @transform_0(%arg0: i32, %arg1: i32) -> (i32, i32, i32) {
    %c0_i32 = arith.constant 0 : i32
    %c0_i32_0 = arith.constant 0 : i32
    return %arg0, %c0_i32, %arg1 : i32, i32, i32
  }
  func.func @transform_1(%arg0: i32, %arg1: i32) -> (i32, i32) {
    %c0_i32 = arith.constant 0 : i32
    %c0_i32_0 = arith.constant 0 : i32
    %c0_i32_1 = arith.constant 0 : i32
    return %c0_i32, %c0_i32_0 : i32, i32
  }
  func.func @transform_2(%arg0: i32, %arg1: i32) -> (i32, i32) {
    %c0_i32 = arith.constant 0 : i32
    %c0_i32_0 = arith.constant 0 : i32
    %c0_i32_1 = arith.constant 0 : i32
    return %c0_i32, %c0_i32_0 : i32, i32
  }
  func.func @transform_3(%arg0: i32, %arg1: i32) -> (i32, i32, i32) {
    %c0_i32 = arith.constant 0 : i32
    %c0_i32_0 = arith.constant 0 : i32
    return %arg0, %c0_i32, %arg1 : i32, i32, i32
  }
  func.func @transform_4(%arg0: i32, %arg1: i32) -> (i32, i32, i32) {
    %c0_i32 = arith.constant 0 : i32
    %c0_i32_0 = arith.constant 0 : i32
    return %arg0, %c0_i32, %arg1 : i32, i32, i32
  }
}

</mosaic_0001>

<llo_original>
// kernel: sequential_with_t_forward.4
$region0: #{sequential_with_t_forward.4}
  #allocation0 [shape = 'u32[]', space=smem, size = 0x4, offset = 0x4, fixed_abs, tag = 'smem constant byte address 0x4 - core index']
  #allocation1 [shape = 'u32[144,128]{1,0:T(1,128)}', space=vmem, size = 0x12000, scoped, tag = 'internal scratch']
  %s0 = inlined_call_operand.vmem [shape: bf16[2,36,256], index: 0, kind: input, shape index: {}]
  %s1 = inlined_call_operand.vmem [shape: bf16[8,36], index: 1, kind: input, shape index: {}]
  %s2 = inlined_call_operand.vmem [shape: f32[8,1], index: 2, kind: input, shape index: {}]
  %s3 = inlined_call_operand.vmem [shape: f32[2,8,1], index: 3, kind: input, shape index: {}]
  %s4 = inlined_call_operand.vmem [shape: f32[2,8,1], index: 4, kind: input, shape index: {}]
  %s5 = inlined_call_operand.vmem [shape: f32[2,8,256], index: 5, kind: output, shape index: {}]
  %s6 = sld [smem:[#allocation0]]
  $region53: #{sequential_with_t_forward.4} parent=0
    _
  %s8 = ssub.s32 1, %s6
  %s9 = scalar_select 0, %s8, %s6
  loop: start=0, step=1, limit=4
  $region2: #{sequential_with_t_forward.4} parent=0 // loop_pre_header
    _
  $region3: #{sequential_with_t_forward.4} parent=0 // loop_header
    %s11 = sphi 0, %s15
    %p12 = scmp.ge.s32.totalorder %s11, 4
    %s18 = sphi 0, %s30
    %s19 = sphi 0, %s26
    %s20 = sphi 0, %s18
    %s21 = sphi 0, %s19
    %s22 = sphi 0, %s20
    %s23 = sphi 0, %s21
    %s35 = sphi 0, %s37
    %s38 = sphi 0, %s35
    %s39 = sphi 0, %s38
    %s55 = sphi 0, %s39
    %s59 = sphi 0, %s59
    %s61 = sphi 0, %s59
    %s62 = sphi 0, %s61
    %s76 = sphi 0, %s62
    %s80 = sphi 0, %s80
    %s82 = sphi 0, %s80
    %s83 = sphi 0, %s82
    %s97 = sphi 0, %s83
    %s103 = sphi 0, %s105
    %s106 = sphi 0, %s103
    %s107 = sphi 0, %s106
    %s123 = sphi 0, %s107
    %s129 = sphi 0, %s131
    %s132 = sphi 0, %s129
    %s133 = sphi 0, %s132
    %s149 = sphi 0, %s133
    %s157 = sphi 0, %s159
    %s160 = sphi 0, %s157
    %s161 = sphi 0, %s160
    %s177 = sphi 0, %s161
  $region4: #{sequential_with_t_forward.4} parent=0 // loop_header_branch
    %14 = sbr.rel (%p12) target = $region8
  $region5: #{sequential_with_t_forward.4} parent=0 // loop_body
    %s16 = ssub.s32 %s11, 1
    %s17 = ssub.s32 %s11, 2
    %s24 = sadd.s32 1, %s19
    %p25 = scmp.ge.s32.totalorder %s24, 1
    %s26 = scalar_select %p25, 0, %s24
    %s27 = sadd.s32 1, %s18
    %s28 = scalar_select %p25, %s27, %s18
    %p29 = scmp.ge.s32.totalorder %s28, 2
    %s30 = scalar_select %p29, 0, %s28
    %s31 = ssub.s32 %s18, %s30
    %s32 = ssub.s32 %s19, %s26
    %s33 = sor.u32 %s31, %s32
    %p34 = scmp.eq.s32.totalorder %s33, 0
    %s36 = sadd.s32 %s35, 1
    %s37 = scalar_select %p34, %s35, %s36
    %p40 = pneg %p34
    %p41 = scmp.eq.s32.totalorder %s11, 1
    %p42 = por %p40, %p41
    %p43 = scmp.ne.s32.totalorder %s35, %s38
    %p44 = scmp.eq.s32.totalorder %s11, 0
    %p45 = por %p43, %p44
    %p46 = scmp.ne.s32.totalorder %s35, %s38
    %p47 = scmp.eq.s32.totalorder %s16, 1
    %p48 = por %p46, %p47
    %p49 = scmp.ne.s32.totalorder %s38, %s39
    %p50 = scmp.eq.s32.totalorder %s16, 0
    %p51 = por %p49, %p50
    %p52 = scmp.ne.s32.totalorder %s38, %s39
    %p53 = scmp.eq.s32.totalorder %s17, 1
    %p54 = por %p52, %p53
    %p56 = scmp.ne.s32.totalorder %s39, %s55
    %p57 = scmp.eq.s32.totalorder %s17, 0
    %p58 = por %p56, %p57
    %s60 = sadd.s32 %s59, 1
    %p63 = scmp.eq.s32.totalorder %s11, 1
    %p64 = scmp.ne.s32.totalorder %s59, %s61
    %p65 = scmp.eq.s32.totalorder %s11, 0
    %p66 = por %p64, %p65
    %p67 = scmp.ne.s32.totalorder %s59, %s61
    %p68 = scmp.eq.s32.totalorder %s16, 1
    %p69 = por %p67, %p68
    %p70 = scmp.ne.s32.totalorder %s61, %s62
    %p71 = scmp.eq.s32.totalorder %s16, 0
    %p72 = por %p70, %p71
    %p73 = scmp.ne.s32.totalorder %s61, %s62
    %p74 = scmp.eq.s32.totalorder %s17, 1
    %p75 = por %p73, %p74
    %p77 = scmp.ne.s32.totalorder %s62, %s76
    %p78 = scmp.eq.s32.totalorder %s17, 0
    %p79 = por %p77, %p78
    %s81 = sadd.s32 %s80, 1
    %p84 = scmp.eq.s32.totalorder %s11, 1
    %p85 = scmp.ne.s32.totalorder %s80, %s82
    %p86 = scmp.eq.s32.totalorder %s11, 0
    %p87 = por %p85, %p86
    %p88 = scmp.ne.s32.totalorder %s80, %s82
    %p89 = scmp.eq.s32.totalorder %s16, 1
    %p90 = por %p88, %p89
    %p91 = scmp.ne.s32.totalorder %s82, %s83
    %p92 = scmp.eq.s32.totalorder %s16, 0
    %p93 = por %p91, %p92
    %p94 = scmp.ne.s32.totalorder %s82, %s83
    %p95 = scmp.eq.s32.totalorder %s17, 1
    %p96 = por %p94, %p95
    %p98 = scmp.ne.s32.totalorder %s83, %s97
    %p99 = scmp.eq.s32.totalorder %s17, 0
    %p100 = por %p98, %p99
    %s101 = ssub.s32 %s18, %s30
    %p102 = scmp.eq.s32.totalorder %s101, 0
    %s104 = sadd.s32 %s103, 1
    %s105 = scalar_select %p102, %s103, %s104
    %p108 = pneg %p102
    %p109 = scmp.eq.s32.totalorder %s11, 1
    %p110 = por %p108, %p109
    %p111 = scmp.ne.s32.totalorder %s103, %s106
    %p112 = scmp.eq.s32.totalorder %s11, 0
    %p113 = por %p111, %p112
    %p114 = scmp.ne.s32.totalorder %s103, %s106
    %p115 = scmp.eq.s32.totalorder %s16, 1
    %p116 = por %p114, %p115
    %p117 = scmp.ne.s32.totalorder %s106, %s107
    %p118 = scmp.eq.s32.totalorder %s16, 0
    %p119 = por %p117, %p118
    %p120 = scmp.ne.s32.totalorder %s106, %s107
    %p121 = scmp.eq.s32.totalorder %s17, 1
    %p122 = por %p120, %p121
    %p124 = scmp.ne.s32.totalorder %s107, %s123
    %p125 = scmp.eq.s32.totalorder %s17, 0
    %p126 = por %p124, %p125
    %s127 = ssub.s32 %s18, %s30
    %p128 = scmp.eq.s32.totalorder %s127, 0
    %s130 = sadd.s32 %s129, 1
    %s131 = scalar_select %p128, %s129, %s130
    %p134 = pneg %p128
    %p135 = scmp.eq.s32.totalorder %s11, 1
    %p136 = por %p134, %p135
    %p137 = scmp.ne.s32.totalorder %s129, %s132
    %p138 = scmp.eq.s32.totalorder %s11, 0
    %p139 = por %p137, %p138
    %p140 = scmp.ne.s32.totalorder %s129, %s132
    %p141 = scmp.eq.s32.totalorder %s16, 1
    %p142 = por %p140, %p141
    %p143 = scmp.ne.s32.totalorder %s132, %s133
    %p144 = scmp.eq.s32.totalorder %s16, 0
    %p145 = por %p143, %p144
    %p146 = scmp.ne.s32.totalorder %s132, %s133
    %p147 = scmp.eq.s32.totalorder %s17, 1
    %p148 = por %p146, %p147
    %p150 = scmp.ne.s32.totalorder %s133, %s149
    %p151 = scmp.eq.s32.totalorder %s17, 0
    %p152 = por %p150, %p151
    %s153 = ssub.s32 %s18, %s30
    %s154 = ssub.s32 %s19, %s26
    %s155 = sor.u32 %s153, %s154
    %p156 = scmp.eq.s32.totalorder %s155, 0
    %s158 = sadd.s32 %s157, 1
    %s159 = scalar_select %p156, %s157, %s158
    %p162 = pneg %p156
    %p163 = scmp.eq.s32.totalorder %s11, 1
    %p164 = por %p162, %p163
    %p165 = scmp.ne.s32.totalorder %s157, %s160
    %p166 = scmp.eq.s32.totalorder %s11, 0
    %p167 = por %p165, %p166
    %p168 = scmp.ne.s32.totalorder %s157, %s160
    %p169 = scmp.eq.s32.totalorder %s16, 1
    %p170 = por %p168, %p169
    %p171 = scmp.ne.s32.totalorder %s160, %s161
    %p172 = scmp.eq.s32.totalorder %s16, 0
    %p173 = por %p171, %p172
    %p174 = scmp.ne.s32.totalorder %s160, %s161
    %p175 = scmp.eq.s32.totalorder %s17, 1
    %p176 = por %p174, %p175
    %p178 = scmp.ne.s32.totalorder %s161, %s177
    %p179 = scmp.eq.s32.totalorder %s17, 0
    %p180 = por %p178, %p179
    %p181 = scmp.le.s32.totalorder 1, %s11
    %p182 = scmp.lt.s32.totalorder %s11, 3
    %p183 = pnand %p181, %p182
    %p184 = pneg %p183
    // Predicated region
    $region9: #{sequential_with_t_forward.4} parent=5 // pred_check
      _
    $region10: #{sequential_with_t_forward.4} parent=5 // pred_check_branch
      %186 = sbr.rel (%p183) target = $region12
    $region11: #{sequential_with_t_forward.4} parent=5 // pred_region
      %s187 = ssub.s32 %s11, 1
      // Predicated region
      $region13: #{sequential_with_t_forward.4} parent=11 // pred_check
        %p188 = pneg %p72
      $region14: #{sequential_with_t_forward.4} parent=11 // pred_check_branch
        %190 = sbr.rel (%p188) target = $region16
      $region15: #{sequential_with_t_forward.4} parent=11 // pred_region
        _
      $region16: #{sequential_with_t_forward.4} parent=11 // pred_fallthru
        _
      // Predicated region
      $region17: #{sequential_with_t_forward.4} parent=11 // pred_check
        %p191 = pneg %p93
      $region18: #{sequential_with_t_forward.4} parent=11 // pred_check_branch
        %193 = sbr.rel (%p191) target = $region20
      $region19: #{sequential_with_t_forward.4} parent=11 // pred_region
        _
      $region20: #{sequential_with_t_forward.4} parent=11 // pred_fallthru
        _
    $region12: #{sequential_with_t_forward.4} parent=5 // pred_fallthru
      _
    %p194 = scmp.lt.s32.totalorder %s11, 2
    // Predicated region
    $region21: #{sequential_with_t_forward.4} parent=5 // pred_check
      %p195 = pneg %p194
    $region22: #{sequential_with_t_forward.4} parent=5 // pred_check_branch
      %197 = sbr.rel (%p195) target = $region24
    $region23: #{sequential_with_t_forward.4} parent=5 // pred_region
      // Predicated region
      $region25: #{sequential_with_t_forward.4} parent=23 // pred_check
        %p198 = pneg %p45
      $region26: #{sequential_with_t_forward.4} parent=23 // pred_check_branch
        %200 = sbr.rel (%p198) target = $region28
      $region27: #{sequential_with_t_forward.4} parent=23 // pred_region
        %s201 = smul.u32 2, %s19
        %p202 = scmp.lt.s32.totalorder %s18, 1
        %s203 = scalar_select %p202, %s18, 1
        %p204 = scmp.lt.s32.totalorder %s201, 1
        %s205 = scalar_select %p204, %s201, 1
        %s206 = smul.addr %s203, 10
        %s207 = sadd.s32 %s205, %s206
        %s208 = smul.addr %s207, 4
        %s209 = scalar_lea.vmem %s0, %s208
        %s210 = smul.u32 2, %s19
      $region28: #{sequential_with_t_forward.4} parent=23 // pred_fallthru
        _
      // Predicated region
      $region29: #{sequential_with_t_forward.4} parent=23 // pred_check
        %p211 = pneg %p113
      $region30: #{sequential_with_t_forward.4} parent=23 // pred_check_branch
        %213 = sbr.rel (%p211) target = $region32
      $region31: #{sequential_with_t_forward.4} parent=23 // pred_region
        %p214 = scmp.lt.s32.totalorder %s18, 1
        %s215 = scalar_select %p214, %s18, 1
        %s216 = smul.addr %s215, 8
        %s217 = scalar_lea.vmem %s3, %s216
      $region32: #{sequential_with_t_forward.4} parent=23 // pred_fallthru
        _
      // Predicated region
      $region33: #{sequential_with_t_forward.4} parent=23 // pred_check
        %p218 = pneg %p139
      $region34: #{sequential_with_t_forward.4} parent=23 // pred_check_branch
        %220 = sbr.rel (%p218) target = $region36
      $region35: #{sequential_with_t_forward.4} parent=23 // pred_region
        %p221 = scmp.lt.s32.totalorder %s18, 1
        %s222 = scalar_select %p221, %s18, 1
        %s223 = smul.addr %s222, 8
        %s224 = scalar_lea.vmem %s4, %s223
      $region36: #{sequential_with_t_forward.4} parent=23 // pred_fallthru
        _
    $region24: #{sequential_with_t_forward.4} parent=5 // pred_fallthru
      _
    %p225 = scmp.le.s32.totalorder 1, %s11
    %p226 = scmp.lt.s32.totalorder %s11, 3
    %p227 = pnand %p225, %p226
    %p228 = pneg %p227
    // Predicated region
    $region37: #{sequential_with_t_forward.4} parent=5 // pred_check
      _
    $region38: #{sequential_with_t_forward.4} parent=5 // pred_check_branch
      %230 = sbr.rel (%p227) target = $region40
    $region39: #{sequential_with_t_forward.4} parent=5 // pred_region
      %s231 = ssub.s32 %s11, 1
      %s232 = smul.u32 2, %s21
      %p233 = scmp.lt.s32.totalorder %s20, 1
      %s234 = scalar_select %p233, %s20, 1
      %p235 = scmp.lt.s32.totalorder %s232, 1
      %s236 = scalar_select %p235, %s232, 1
      %s237 = smul.addr %s234, 10
      %s238 = sadd.s32 %s236, %s237
      %s239 = smul.addr %s238, 4
      %s240 = scalar_lea.vmem %s0, %s239
      %p241 = pneg %p51
      %p242 = pneg %p48
      %p243 = pneg %p72
      %p244 = pneg %p69
      %p245 = pneg %p93
      %p246 = pneg %p90
      %p247 = scmp.lt.s32.totalorder %s20, 1
      %s248 = scalar_select %p247, %s20, 1
      %s249 = smul.addr %s248, 8
      %s250 = scalar_lea.vmem %s3, %s249
      %p251 = pneg %p119
      %p252 = pneg %p116
      %p253 = scmp.lt.s32.totalorder %s20, 1
      %s254 = scalar_select %p253, %s20, 1
      %s255 = smul.addr %s254, 8
      %s256 = scalar_lea.vmem %s4, %s255
      %p257 = pneg %p145
      %p258 = pneg %p142
      %p259 = pneg %p173
      %p260 = pneg %p170
      %s261 = smul.u32 2, %s21
      %p262 = scmp.lt.s32.totalorder %s20, 1
      %s263 = scalar_select %p262, %s20, 1
      %p264 = scmp.lt.s32.totalorder %s261, 1
      %s265 = scalar_select %p264, %s261, 1
      %s266 = smul.addr %s263, 2
      %s267 = sadd.s32 %s265, %s266
      %s268 = smul.addr %s267, 8
      %s269 = scalar_lea.vmem %s5, %s268
      %s270 = smul.u32 2, %s21
      %p271 = scmp.lt.s32.totalorder %s20, 1
      %s272 = scalar_select %p271, %s20, 1
      %p273 = scmp.lt.s32.totalorder %s270, 1
      %s274 = scalar_select %p273, %s270, 1
      %s275 = smul.addr %s272, 10
      %s276 = sadd.s32 %s274, %s275
      %s277 = smul.addr %s276, 4
      %s278 = scalar_lea.vmem %s0, %s277
      %s279 = smul.u32 2, %s21
      %p280 = scmp.lt.s32.totalorder %s20, 1
      %s281 = scalar_select %p280, %s20, 1
      %s282 = smul.addr %s281, 8
      %s283 = scalar_lea.vmem %s3, %s282
      %p284 = scmp.lt.s32.totalorder %s20, 1
      %s285 = scalar_select %p284, %s20, 1
      %s286 = smul.addr %s285, 8
      %s287 = scalar_lea.vmem %s4, %s286
      %s288 = smul.u32 2, %s21
      %p289 = scmp.lt.s32.totalorder %s20, 1
      %s290 = scalar_select %p289, %s20, 1
      %p291 = scmp.lt.s32.totalorder %s288, 1
      %s292 = scalar_select %p291, %s288, 1
      %s293 = smul.addr %s290, 2
      %s294 = sadd.s32 %s292, %s293
      %s295 = smul.addr %s294, 8
      %s296 = scalar_lea.vmem %s5, %s295
      %s297 = smul.u32 2, %s21
      %v299 = vld [vmem:[%s1] sm:$0xf]
      %v300 = vld [vmem:[%s278] sm:$0xff]
      %v301 = vld [vmem:[%s278 + $0x8] sm:$0xff]
      %v302 = vld [vmem:[%s278 + $0x10] sm:$0xff]
      %v303 = vld [vmem:[%s278 + $0x18] sm:$0xff]
      %v304 = vld [vmem:[%s278 + $0x20] sm:$0x33]
      %v305 = vld [vmem:[%s2] sm:$0xff]
      %307 = vset.pattern.permute.xlu0 0
      %308 = vperm.xlu0 %307, %v305
      %v309 = vpop.permute.xlu0 %308
      %v316 = vunpack.c.l.b16 %v300
      %v317 = vunpack.c.h.b16 %v300
      %v318 = vunpack.c.l.b16 %v301
      %v319 = vunpack.c.h.b16 %v301
      %v320 = vunpack.c.l.b16 %v302
      %v321 = vunpack.c.h.b16 %v302
      %v322 = vunpack.c.l.b16 %v303
      %v323 = vunpack.c.h.b16 %v303
      %v324 = vunpack.c.l.b16 %v304
      %v325 = vunpack.c.h.b16 %v304
      %v326 = vpack.c.b16 %v318, %v316
      %v327 = vpack.c.b16 %v319, %v317
      %v328 = vpack.c.b16 %v322, %v320
      %v329 = vpack.c.b16 %v323, %v321
      %v330 = vpack.c.b16 %v324, %v324
      %v331 = vpack.c.b16 %v325, %v325
      %vm336 = vcmask 293888
      %v338 = vsel %vm336, %v299, 0
      %vm340 = vcmask 1041408
      %v342 = vsel %vm340, %v330, 0
      %v345 = vsel %vm340, %v331, 0
      %347 = vmatprep.subr.bf16.mxu0 %v327
      %348 = vmatpush1.bf16.msra.mxu0 %v326
      %349 = vmatprep.subr.bf16.mxu0 %v329
      %350 = vmatpush1.bf16.msra.mxu0 %v328
      %351 = vmatprep.subr.bf16.mxu0 %v345
      %352 = vmatpush1.bf16.msra.mxu0 %v342
      %353 = vmatprep.subr.bf16.mxu0 0
      %354 = vmatpush1.bf16.msra.mxu0 0
      %355 = vmatprep.subr.bf16.mxu0 0
      %356 = vmatpush1.bf16.msra.mxu0 0
      %357 = vmatprep.subr.bf16.mxu0 0
      %358 = vmatpush1.bf16.msra.mxu0 0
      %359 = vmatprep.subr.bf16.mxu0 0
      %360 = vmatpush1.bf16.msra.mxu0 0
      %361 = vmatprep.subr.bf16.mxu0 0
      %362 = vmatpush1.bf16.msra.mxu0 0
      %363 = vmatprep.subr.bf16.mxu0 0
      %364 = vmatpush1.bf16.msra.mxu0 0
      %365 = vmatprep.subr.bf16.mxu0 0
      %366 = vmatpush1.bf16.msra.mxu0 0
      %367 = vmatprep.subr.bf16.mxu0 0
      %368 = vmatpush1.bf16.msra.mxu0 0
      %369 = vmatprep.subr.bf16.mxu0 0
      %370 = vmatpush1.bf16.msra.mxu0 0
      %371 = vmatprep.subr.bf16.mxu0 0
      %372 = vmatpush1.bf16.msra.mxu0 0
      %373 = vmatprep.subr.bf16.mxu0 0
      %374 = vmatpush1.bf16.msra.mxu0 0
      %375 = vmatprep.subr.bf16.mxu0 0
      %376 = vmatpush1.bf16.msra.mxu0 0
      %377 = vmatprep.subr.bf16.mxu0 0
      %378 = vmatpush1.bf16.msra.mxu0 0
      %379 = vmatprep.mubr.bf16.mxu0 0
      %380 = vmatmul.mubr.bf16.gmra.mrb[0].mxu0 %v338
      %v381 = vpop.f32.mrb[0].mxu0
      %v382 = vadd.f32 %v309, %v381
      %v383 = vpop.f32.mrb[0].mxu0
      %v384 = vadd.f32 %v309, %v383
      %v385 = vpop.f32.mrb[0].mxu0
      %v386 = vpop.f32.mrb[0].mxu0
      %387 = vdwg.mxu0
      %v388 = vld [vmem:[%s283] sm:$0xff]
      %390 = vset.pattern.permute.xlu0 0
      %391 = vperm.xlu0 %390, %v388
      %v392 = vpop.permute.xlu0 %391
      %v394 = vmul.f32 %v382, %v392
      %v395 = vmul.f32 %v384, %v392
      %v396 = vld [vmem:[%s287] sm:$0xff]
      %398 = vset.pattern.permute.xlu0 0
      %399 = vperm.xlu0 %398, %v396
      %v400 = vpop.permute.xlu0 %399
      %v402 = vadd.f32 %v394, %v400
      %v403 = vadd.f32 %v395, %v400
      %404 = vst [vmem:[%s296] sm:$0xff] %v402
      %405 = vst [vmem:[%s296 + $0x8] sm:$0xff] %v403
      %s406 = smul.u32 2, %s21
      %p407 = scmp.lt.s32.totalorder %s20, 1
      %s408 = scalar_select %p407, %s20, 1
      %p409 = scmp.lt.s32.totalorder %s406, 1
      %s410 = scalar_select %p409, %s406, 1
      %s411 = smul.addr %s408, 2
      %s412 = sadd.s32 %s410, %s411
      %s413 = smul.addr %s412, 8
      %s414 = scalar_lea.vmem %s5, %s413
      // Predicated region
      $region41: #{sequential_with_t_forward.4} parent=39 // pred_check
        %p415 = pneg %p170
      $region42: #{sequential_with_t_forward.4} parent=39 // pred_check_branch
        %417 = sbr.rel (%p415) target = $region44
      $region43: #{sequential_with_t_forward.4} parent=39 // pred_region
        %s418 = smul.u32 2, %s21
      $region44: #{sequential_with_t_forward.4} parent=39 // pred_fallthru
        _
    $region40: #{sequential_with_t_forward.4} parent=5 // pred_fallthru
      _
    %p419 = scmp.le.s32.totalorder 2, %s11
    // Predicated region
    $region45: #{sequential_with_t_forward.4} parent=5 // pred_check
      %p420 = pneg %p419
    $region46: #{sequential_with_t_forward.4} parent=5 // pred_check_branch
      %422 = sbr.rel (%p420) target = $region48
    $region47: #{sequential_with_t_forward.4} parent=5 // pred_region
      %s423 = ssub.s32 %s11, 2
      // Predicated region
      $region49: #{sequential_with_t_forward.4} parent=47 // pred_check
        %p424 = pneg %p176
      $region50: #{sequential_with_t_forward.4} parent=47 // pred_check_branch
        %426 = sbr.rel (%p424) target = $region52
      $region51: #{sequential_with_t_forward.4} parent=47 // pred_region
        %s427 = smul.u32 2, %s23
        %p428 = scmp.lt.s32.totalorder %s22, 1
        %s429 = scalar_select %p428, %s22, 1
        %p430 = scmp.lt.s32.totalorder %s427, 1
        %s431 = scalar_select %p430, %s427, 1
        %s432 = smul.addr %s429, 2
        %s433 = sadd.s32 %s431, %s432
        %s434 = smul.addr %s433, 8
        %s435 = scalar_lea.vmem %s5, %s434
      $region52: #{sequential_with_t_forward.4} parent=47 // pred_fallthru
        _
    $region48: #{sequential_with_t_forward.4} parent=5 // pred_fallthru
      _
  $region6: #{sequential_with_t_forward.4} parent=0 // loop_footer
    %s15 = sadd.s32 1, %s11
  $region7: #{sequential_with_t_forward.4} parent=0 // loop_footer_branch
    %10 = sbr.rel target = $region3
  $region8: #{sequential_with_t_forward.4} parent=0 // loop_exit
    _

// kernel: sequential_with_t_forward.5
$region0: #{sequential_with_t_forward.5}
  #allocation0 [shape = 'u32[]', space=smem, size = 0x4, offset = 0x4, fixed_abs, tag = 'smem constant byte address 0x4 - core index']
  #allocation1 [shape = 'u32[144,128]{1,0:T(1,128)}', space=vmem, size = 0x12000, scoped, tag = 'internal scratch']
  %s0 = inlined_call_operand.vmem [shape: bf16[2,72,256], index: 0, kind: input, shape index: {}]
  %s1 = inlined_call_operand.vmem [shape: bf16[8,72], index: 1, kind: input, shape index: {}]
  %s2 = inlined_call_operand.vmem [shape: f32[8,1], index: 2, kind: input, shape index: {}]
  %s3 = inlined_call_operand.vmem [shape: bf16[2,4,256], index: 3, kind: input, shape index: {}]
  %s4 = inlined_call_operand.vmem [shape: bf16[8,4], index: 4, kind: input, shape index: {}]
  %s5 = inlined_call_operand.vmem [shape: f32[8,1], index: 5, kind: input, shape index: {}]
  %s6 = inlined_call_operand.vmem [shape: f32[2,8,256], index: 6, kind: output, shape index: {}]
  %s7 = sld [smem:[#allocation0]]
  $region57: #{sequential_with_t_forward.5} parent=0
    _
  %s9 = ssub.s32 1, %s7
  %s10 = scalar_select 0, %s9, %s7
  loop: start=0, step=1, limit=4
  $region2: #{sequential_with_t_forward.5} parent=0 // loop_pre_header
    _
  $region3: #{sequential_with_t_forward.5} parent=0 // loop_header
    %s12 = sphi 0, %s16
    %p13 = scmp.ge.s32.totalorder %s12, 4
    %s19 = sphi 0, %s31
    %s20 = sphi 0, %s27
    %s21 = sphi 0, %s19
    %s22 = sphi 0, %s20
    %s23 = sphi 0, %s21
    %s24 = sphi 0, %s22
    %s36 = sphi 0, %s38
    %s39 = sphi 0, %s36
    %s40 = sphi 0, %s39
    %s56 = sphi 0, %s40
    %s60 = sphi 0, %s60
    %s62 = sphi 0, %s60
    %s63 = sphi 0, %s62
    %s77 = sphi 0, %s63
    %s81 = sphi 0, %s81
    %s83 = sphi 0, %s81
    %s84 = sphi 0, %s83
    %s98 = sphi 0, %s84
    %s106 = sphi 0, %s108
    %s109 = sphi 0, %s106
    %s110 = sphi 0, %s109
    %s126 = sphi 0, %s110
    %s130 = sphi 0, %s130
    %s132 = sphi 0, %s130
    %s133 = sphi 0, %s132
    %s147 = sphi 0, %s133
    %s151 = sphi 0, %s151
    %s153 = sphi 0, %s151
    %s154 = sphi 0, %s153
    %s168 = sphi 0, %s154
    %s176 = sphi 0, %s178
    %s179 = sphi 0, %s176
    %s180 = sphi 0, %s179
    %s196 = sphi 0, %s180
  $region4: #{sequential_with_t_forward.5} parent=0 // loop_header_branch
    %15 = sbr.rel (%p13) target = $region8
  $region5: #{sequential_with_t_forward.5} parent=0 // loop_body
    %s17 = ssub.s32 %s12, 1
    %s18 = ssub.s32 %s12, 2
    %s25 = sadd.s32 1, %s20
    %p26 = scmp.ge.s32.totalorder %s25, 1
    %s27 = scalar_select %p26, 0, %s25
    %s28 = sadd.s32 1, %s19
    %s29 = scalar_select %p26, %s28, %s19
    %p30 = scmp.ge.s32.totalorder %s29, 2
    %s31 = scalar_select %p30, 0, %s29
    %s32 = ssub.s32 %s19, %s31
    %s33 = ssub.s32 %s20, %s27
    %s34 = sor.u32 %s32, %s33
    %p35 = scmp.eq.s32.totalorder %s34, 0
    %s37 = sadd.s32 %s36, 1
    %s38 = scalar_select %p35, %s36, %s37
    %p41 = pneg %p35
    %p42 = scmp.eq.s32.totalorder %s12, 1
    %p43 = por %p41, %p42
    %p44 = scmp.ne.s32.totalorder %s36, %s39
    %p45 = scmp.eq.s32.totalorder %s12, 0
    %p46 = por %p44, %p45
    %p47 = scmp.ne.s32.totalorder %s36, %s39
    %p48 = scmp.eq.s32.totalorder %s17, 1
    %p49 = por %p47, %p48
    %p50 = scmp.ne.s32.totalorder %s39, %s40
    %p51 = scmp.eq.s32.totalorder %s17, 0
    %p52 = por %p50, %p51
    %p53 = scmp.ne.s32.totalorder %s39, %s40
    %p54 = scmp.eq.s32.totalorder %s18, 1
    %p55 = por %p53, %p54
    %p57 = scmp.ne.s32.totalorder %s40, %s56
    %p58 = scmp.eq.s32.totalorder %s18, 0
    %p59 = por %p57, %p58
    %s61 = sadd.s32 %s60, 1
    %p64 = scmp.eq.s32.totalorder %s12, 1
    %p65 = scmp.ne.s32.totalorder %s60, %s62
    %p66 = scmp.eq.s32.totalorder %s12, 0
    %p67 = por %p65, %p66
    %p68 = scmp.ne.s32.totalorder %s60, %s62
    %p69 = scmp.eq.s32.totalorder %s17, 1
    %p70 = por %p68, %p69
    %p71 = scmp.ne.s32.totalorder %s62, %s63
    %p72 = scmp.eq.s32.totalorder %s17, 0
    %p73 = por %p71, %p72
    %p74 = scmp.ne.s32.totalorder %s62, %s63
    %p75 = scmp.eq.s32.totalorder %s18, 1
    %p76 = por %p74, %p75
    %p78 = scmp.ne.s32.totalorder %s63, %s77
    %p79 = scmp.eq.s32.totalorder %s18, 0
    %p80 = por %p78, %p79
    %s82 = sadd.s32 %s81, 1
    %p85 = scmp.eq.s32.totalorder %s12, 1
    %p86 = scmp.ne.s32.totalorder %s81, %s83
    %p87 = scmp.eq.s32.totalorder %s12, 0
    %p88 = por %p86, %p87
    %p89 = scmp.ne.s32.totalorder %s81, %s83
    %p90 = scmp.eq.s32.totalorder %s17, 1
    %p91 = por %p89, %p90
    %p92 = scmp.ne.s32.totalorder %s83, %s84
    %p93 = scmp.eq.s32.totalorder %s17, 0
    %p94 = por %p92, %p93
    %p95 = scmp.ne.s32.totalorder %s83, %s84
    %p96 = scmp.eq.s32.totalorder %s18, 1
    %p97 = por %p95, %p96
    %p99 = scmp.ne.s32.totalorder %s84, %s98
    %p100 = scmp.eq.s32.totalorder %s18, 0
    %p101 = por %p99, %p100
    %s102 = ssub.s32 %s19, %s31
    %s103 = ssub.s32 %s20, %s27
    %s104 = sor.u32 %s102, %s103
    %p105 = scmp.eq.s32.totalorder %s104, 0
    %s107 = sadd.s32 %s106, 1
    %s108 = scalar_select %p105, %s106, %s107
    %p111 = pneg %p105
    %p112 = scmp.eq.s32.totalorder %s12, 1
    %p113 = por %p111, %p112
    %p114 = scmp.ne.s32.totalorder %s106, %s109
    %p115 = scmp.eq.s32.totalorder %s12, 0
    %p116 = por %p114, %p115
    %p117 = scmp.ne.s32.totalorder %s106, %s109
    %p118 = scmp.eq.s32.totalorder %s17, 1
    %p119 = por %p117, %p118
    %p120 = scmp.ne.s32.totalorder %s109, %s110
    %p121 = scmp.eq.s32.totalorder %s17, 0
    %p122 = por %p120, %p121
    %p123 = scmp.ne.s32.totalorder %s109, %s110
    %p124 = scmp.eq.s32.totalorder %s18, 1
    %p125 = por %p123, %p124
    %p127 = scmp.ne.s32.totalorder %s110, %s126
    %p128 = scmp.eq.s32.totalorder %s18, 0
    %p129 = por %p127, %p128
    %s131 = sadd.s32 %s130, 1
    %p134 = scmp.eq.s32.totalorder %s12, 1
    %p135 = scmp.ne.s32.totalorder %s130, %s132
    %p136 = scmp.eq.s32.totalorder %s12, 0
    %p137 = por %p135, %p136
    %p138 = scmp.ne.s32.totalorder %s130, %s132
    %p139 = scmp.eq.s32.totalorder %s17, 1
    %p140 = por %p138, %p139
    %p141 = scmp.ne.s32.totalorder %s132, %s133
    %p142 = scmp.eq.s32.totalorder %s17, 0
    %p143 = por %p141, %p142
    %p144 = scmp.ne.s32.totalorder %s132, %s133
    %p145 = scmp.eq.s32.totalorder %s18, 1
    %p146 = por %p144, %p145
    %p148 = scmp.ne.s32.totalorder %s133, %s147
    %p149 = scmp.eq.s32.totalorder %s18, 0
    %p150 = por %p148, %p149
    %s152 = sadd.s32 %s151, 1
    %p155 = scmp.eq.s32.totalorder %s12, 1
    %p156 = scmp.ne.s32.totalorder %s151, %s153
    %p157 = scmp.eq.s32.totalorder %s12, 0
    %p158 = por %p156, %p157
    %p159 = scmp.ne.s32.totalorder %s151, %s153
    %p160 = scmp.eq.s32.totalorder %s17, 1
    %p161 = por %p159, %p160
    %p162 = scmp.ne.s32.totalorder %s153, %s154
    %p163 = scmp.eq.s32.totalorder %s17, 0
    %p164 = por %p162, %p163
    %p165 = scmp.ne.s32.totalorder %s153, %s154
    %p166 = scmp.eq.s32.totalorder %s18, 1
    %p167 = por %p165, %p166
    %p169 = scmp.ne.s32.totalorder %s154, %s168
    %p170 = scmp.eq.s32.totalorder %s18, 0
    %p171 = por %p169, %p170
    %s172 = ssub.s32 %s19, %s31
    %s173 = ssub.s32 %s20, %s27
    %s174 = sor.u32 %s172, %s173
    %p175 = scmp.eq.s32.totalorder %s174, 0
    %s177 = sadd.s32 %s176, 1
    %s178 = scalar_select %p175, %s176, %s177
    %p181 = pneg %p175
    %p182 = scmp.eq.s32.totalorder %s12, 1
    %p183 = por %p181, %p182
    %p184 = scmp.ne.s32.totalorder %s176, %s179
    %p185 = scmp.eq.s32.totalorder %s12, 0
    %p186 = por %p184, %p185
    %p187 = scmp.ne.s32.totalorder %s176, %s179
    %p188 = scmp.eq.s32.totalorder %s17, 1
    %p189 = por %p187, %p188
    %p190 = scmp.ne.s32.totalorder %s179, %s180
    %p191 = scmp.eq.s32.totalorder %s17, 0
    %p192 = por %p190, %p191
    %p193 = scmp.ne.s32.totalorder %s179, %s180
    %p194 = scmp.eq.s32.totalorder %s18, 1
    %p195 = por %p193, %p194
    %p197 = scmp.ne.s32.totalorder %s180, %s196
    %p198 = scmp.eq.s32.totalorder %s18, 0
    %p199 = por %p197, %p198
    %p200 = scmp.le.s32.totalorder 1, %s12
    %p201 = scmp.lt.s32.totalorder %s12, 3
    %p202 = pnand %p200, %p201
    %p203 = pneg %p202
    // Predicated region
    $region9: #{sequential_with_t_forward.5} parent=5 // pred_check
      _
    $region10: #{sequential_with_t_forward.5} parent=5 // pred_check_branch
      %205 = sbr.rel (%p202) target = $region12
    $region11: #{sequential_with_t_forward.5} parent=5 // pred_region
      %s206 = ssub.s32 %s12, 1
      // Predicated region
      $region13: #{sequential_with_t_forward.5} parent=11 // pred_check
        %p207 = pneg %p73
      $region14: #{sequential_with_t_forward.5} parent=11 // pred_check_branch
        %209 = sbr.rel (%p207) target = $region16
      $region15: #{sequential_with_t_forward.5} parent=11 // pred_region
        _
      $region16: #{sequential_with_t_forward.5} parent=11 // pred_fallthru
        _
      // Predicated region
      $region17: #{sequential_with_t_forward.5} parent=11 // pred_check
        %p210 = pneg %p94
      $region18: #{sequential_with_t_forward.5} parent=11 // pred_check_branch
        %212 = sbr.rel (%p210) target = $region20
      $region19: #{sequential_with_t_forward.5} parent=11 // pred_region
        _
      $region20: #{sequential_with_t_forward.5} parent=11 // pred_fallthru
        _
      // Predicated region
      $region21: #{sequential_with_t_forward.5} parent=11 // pred_check
        %p213 = pneg %p143
      $region22: #{sequential_with_t_forward.5} parent=11 // pred_check_branch
        %215 = sbr.rel (%p213) target = $region24
      $region23: #{sequential_with_t_forward.5} parent=11 // pred_region
        _
      $region24: #{sequential_with_t_forward.5} parent=11 // pred_fallthru
        _
      // Predicated region
      $region25: #{sequential_with_t_forward.5} parent=11 // pred_check
        %p216 = pneg %p164
      $region26: #{sequential_with_t_forward.5} parent=11 // pred_check_branch
        %218 = sbr.rel (%p216) target = $region28
      $region27: #{sequential_with_t_forward.5} parent=11 // pred_region
        _
      $region28: #{sequential_with_t_forward.5} parent=11 // pred_fallthru
        _
    $region12: #{sequential_with_t_forward.5} parent=5 // pred_fallthru
      _
    %p219 = scmp.lt.s32.totalorder %s12, 2
    // Predicated region
    $region29: #{sequential_with_t_forward.5} parent=5 // pred_check
      %p220 = pneg %p219
    $region30: #{sequential_with_t_forward.5} parent=5 // pred_check_branch
      %222 = sbr.rel (%p220) target = $region32
    $region31: #{sequential_with_t_forward.5} parent=5 // pred_region
      // Predicated region
      $region33: #{sequential_with_t_forward.5} parent=31 // pred_check
        %p223 = pneg %p46
      $region34: #{sequential_with_t_forward.5} parent=31 // pred_check_branch
        %225 = sbr.rel (%p223) target = $region36
      $region35: #{sequential_with_t_forward.5} parent=31 // pred_region
        %s226 = smul.u32 2, %s20
        %p227 = scmp.lt.s32.totalorder %s19, 1
        %s228 = scalar_select %p227, %s19, 1
        %p229 = scmp.lt.s32.totalorder %s226, 1
        %s230 = scalar_select %p229, %s226, 1
        %s231 = smul.addr %s228, 18
        %s232 = sadd.s32 %s230, %s231
        %s233 = smul.addr %s232, 4
        %s234 = scalar_lea.vmem %s0, %s233
        %s235 = smul.u32 2, %s20
      $region36: #{sequential_with_t_forward.5} parent=31 // pred_fallthru
        _
      // Predicated region
      $region37: #{sequential_with_t_forward.5} parent=31 // pred_check
        %p236 = pneg %p116
      $region38: #{sequential_with_t_forward.5} parent=31 // pred_check_branch
        %238 = sbr.rel (%p236) target = $region40
      $region39: #{sequential_with_t_forward.5} parent=31 // pred_region
        %s239 = smul.u32 2, %s20
        %p240 = scmp.lt.s32.totalorder %s19, 1
        %s241 = scalar_select %p240, %s19, 1
        %p242 = scmp.lt.s32.totalorder %s239, 1
        %s243 = scalar_select %p242, %s239, 1
        %s244 = smul.addr %s241, 2
        %s245 = sadd.s32 %s243, %s244
        %s246 = smul.addr %s245, 2
        %s247 = scalar_lea.vmem %s3, %s246
        %s248 = smul.u32 2, %s20
      $region40: #{sequential_with_t_forward.5} parent=31 // pred_fallthru
        _
    $region32: #{sequential_with_t_forward.5} parent=5 // pred_fallthru
      _
    %p249 = scmp.le.s32.totalorder 1, %s12
    %p250 = scmp.lt.s32.totalorder %s12, 3
    %p251 = pnand %p249, %p250
    %p252 = pneg %p251
    // Predicated region
    $region41: #{sequential_with_t_forward.5} parent=5 // pred_check
      _
    $region42: #{sequential_with_t_forward.5} parent=5 // pred_check_branch
      %254 = sbr.rel (%p251) target = $region44
    $region43: #{sequential_with_t_forward.5} parent=5 // pred_region
      %s255 = ssub.s32 %s12, 1
      %s256 = smul.u32 2, %s22
      %p257 = scmp.lt.s32.totalorder %s21, 1
      %s258 = scalar_select %p257, %s21, 1
      %p259 = scmp.lt.s32.totalorder %s256, 1
      %s260 = scalar_select %p259, %s256, 1
      %s261 = smul.addr %s258, 18
      %s262 = sadd.s32 %s260, %s261
      %s263 = smul.addr %s262, 4
      %s264 = scalar_lea.vmem %s0, %s263
      %p265 = pneg %p52
      %p266 = pneg %p49
      %p267 = pneg %p73
      %p268 = pneg %p70
      %p269 = pneg %p94
      %p270 = pneg %p91
      %s271 = smul.u32 2, %s22
      %p272 = scmp.lt.s32.totalorder %s21, 1
      %s273 = scalar_select %p272, %s21, 1
      %p274 = scmp.lt.s32.totalorder %s271, 1
      %s275 = scalar_select %p274, %s271, 1
      %s276 = smul.addr %s273, 2
      %s277 = sadd.s32 %s275, %s276
      %s278 = smul.addr %s277, 2
      %s279 = scalar_lea.vmem %s3, %s278
      %p280 = pneg %p122
      %p281 = pneg %p119
      %p282 = pneg %p143
      %p283 = pneg %p140
      %p284 = pneg %p164
      %p285 = pneg %p161
      %p286 = pneg %p192
      %p287 = pneg %p189
      %s288 = smul.u32 2, %s22
      %p289 = scmp.lt.s32.totalorder %s21, 1
      %s290 = scalar_select %p289, %s21, 1
      %p291 = scmp.lt.s32.totalorder %s288, 1
      %s292 = scalar_select %p291, %s288, 1
      %s293 = smul.addr %s290, 2
      %s294 = sadd.s32 %s292, %s293
      %s295 = smul.addr %s294, 8
      %s296 = scalar_lea.vmem %s6, %s295
      %s297 = smul.u32 2, %s22
      %p298 = scmp.lt.s32.totalorder %s21, 1
      %s299 = scalar_select %p298, %s21, 1
      %p300 = scmp.lt.s32.totalorder %s297, 1
      %s301 = scalar_select %p300, %s297, 1
      %s302 = smul.addr %s299, 18
      %s303 = sadd.s32 %s301, %s302
      %s304 = smul.addr %s303, 4
      %s305 = scalar_lea.vmem %s0, %s304
      %s306 = smul.u32 2, %s22
      %s307 = smul.u32 2, %s22
      %p308 = scmp.lt.s32.totalorder %s21, 1
      %s309 = scalar_select %p308, %s21, 1
      %p310 = scmp.lt.s32.totalorder %s307, 1
      %s311 = scalar_select %p310, %s307, 1
      %s312 = smul.addr %s309, 2
      %s313 = sadd.s32 %s311, %s312
      %s314 = smul.addr %s313, 2
      %s315 = scalar_lea.vmem %s3, %s314
      %s316 = smul.u32 2, %s22
      %s317 = smul.u32 2, %s22
      %p318 = scmp.lt.s32.totalorder %s21, 1
      %s319 = scalar_select %p318, %s21, 1
      %p320 = scmp.lt.s32.totalorder %s317, 1
      %s321 = scalar_select %p320, %s317, 1
      %s322 = smul.addr %s319, 2
      %s323 = sadd.s32 %s321, %s322
      %s324 = smul.addr %s323, 8
      %s325 = scalar_lea.vmem %s6, %s324
      %s326 = smul.u32 2, %s22
      %v328 = vld [vmem:[%s1] sm:$0xf]
      %v329 = vld [vmem:[%s305] sm:$0xff]
      %v330 = vld [vmem:[%s305 + $0x8] sm:$0xff]
      %v331 = vld [vmem:[%s305 + $0x10] sm:$0xff]
      %v332 = vld [vmem:[%s305 + $0x18] sm:$0xff]
      %v333 = vld [vmem:[%s305 + $0x20] sm:$0xff]
      %v334 = vld [vmem:[%s305 + $0x28] sm:$0xff]
      %v335 = vld [vmem:[%s305 + $0x30] sm:$0xff]
      %v336 = vld [vmem:[%s305 + $0x38] sm:$0xff]
      %v337 = vld [vmem:[%s305 + $0x40] sm:$0xff]
      %v338 = vld [vmem:[%s2] sm:$0xff]
      %340 = vset.pattern.permute.xlu0 0
      %341 = vperm.xlu0 %340, %v338
      %v342 = vpop.permute.xlu0 %341
      %v353 = vunpack.c.l.b16 %v329
      %v354 = vunpack.c.h.b16 %v329
      %v355 = vunpack.c.l.b16 %v330
      %v356 = vunpack.c.h.b16 %v330
      %v357 = vunpack.c.l.b16 %v331
      %v358 = vunpack.c.h.b16 %v331
      %v359 = vunpack.c.l.b16 %v332
      %v360 = vunpack.c.h.b16 %v332
      %v361 = vunpack.c.l.b16 %v333
      %v362 = vunpack.c.h.b16 %v333
      %v363 = vunpack.c.l.b16 %v334
      %v364 = vunpack.c.h.b16 %v334
      %v365 = vunpack.c.l.b16 %v335
      %v366 = vunpack.c.h.b16 %v335
      %v367 = vunpack.c.l.b16 %v336
      %v368 = vunpack.c.h.b16 %v336
      %v369 = vunpack.c.l.b16 %v337
      %v370 = vunpack.c.h.b16 %v337
      %v371 = vpack.c.b16 %v355, %v353
      %v372 = vpack.c.b16 %v356, %v354
      %v373 = vpack.c.b16 %v359, %v357
      %v374 = vpack.c.b16 %v360, %v358
      %v375 = vpack.c.b16 %v363, %v361
      %v376 = vpack.c.b16 %v364, %v362
      %v377 = vpack.c.b16 %v367, %v365
      %v378 = vpack.c.b16 %v368, %v366
      %v379 = vpack.c.b16 %v369, %v369
      %v380 = vpack.c.b16 %v370, %v370
      %vm389 = vcmask 588800
      %v391 = vsel %vm389, %v328, 0
      %vm393 = vcmask 1043456
      %v395 = vsel %vm393, %v379, 0
      %v398 = vsel %vm393, %v380, 0
      %400 = vmatprep.subr.bf16.mxu0 %v372
      %401 = vmatpush1.bf16.msra.mxu0 %v371
      %402 = vmatprep.subr.bf16.mxu0 %v374
      %403 = vmatpush1.bf16.msra.mxu0 %v373
      %404 = vmatprep.subr.bf16.mxu0 %v376
      %405 = vmatpush1.bf16.msra.mxu0 %v375
      %406 = vmatprep.subr.bf16.mxu0 %v378
      %407 = vmatpush1.bf16.msra.mxu0 %v377
      %408 = vmatprep.subr.bf16.mxu0 %v398
      %409 = vmatpush1.bf16.msra.mxu0 %v395
      %410 = vmatprep.subr.bf16.mxu0 0
      %411 = vmatpush1.bf16.msra.mxu0 0
      %412 = vmatprep.subr.bf16.mxu0 0
      %413 = vmatpush1.bf16.msra.mxu0 0
      %414 = vmatprep.subr.bf16.mxu0 0
      %415 = vmatpush1.bf16.msra.mxu0 0
      %416 = vmatprep.subr.bf16.mxu0 0
      %417 = vmatpush1.bf16.msra.mxu0 0
      %418 = vmatprep.subr.bf16.mxu0 0
      %419 = vmatpush1.bf16.msra.mxu0 0
      %420 = vmatprep.subr.bf16.mxu0 0
      %421 = vmatpush1.bf16.msra.mxu0 0
      %422 = vmatprep.subr.bf16.mxu0 0
      %423 = vmatpush1.bf16.msra.mxu0 0
      %424 = vmatprep.subr.bf16.mxu0 0
      %425 = vmatpush1.bf16.msra.mxu0 0
      %426 = vmatprep.subr.bf16.mxu0 0
      %427 = vmatpush1.bf16.msra.mxu0 0
      %428 = vmatprep.subr.bf16.mxu0 0
      %429 = vmatpush1.bf16.msra.mxu0 0
      %430 = vmatprep.subr.bf16.mxu0 0
      %431 = vmatpush1.bf16.msra.mxu0 0
      %432 = vmatprep.mubr.bf16.mxu0 0
      %433 = vmatmul.mubr.bf16.gmra.mrb[0].mxu0 %v391
      %v434 = vpop.f32.mrb[0].mxu0
      %v435 = vadd.f32 %v342, %v434
      %v436 = vpop.f32.mrb[0].mxu0
      %v437 = vadd.f32 %v342, %v436
      %v438 = vpop.f32.mrb[0].mxu0
      %v439 = vpop.f32.mrb[0].mxu0
      %440 = vdwg.mxu0
      %v441 = vld [vmem:[%s4] sm:$0xf]
      %v442 = vld [vmem:[%s315] sm:$0xf]
      %v445 = vunpack.c.l.s4 1983009808
      %v446 = vunpack.c.0.s8 %v445
      %v447 = vlaneseq
      %v448 = vshrl.u32 %v447, 7
      %v449 = vsub.s32 %v446, %v448
      %v450 = vrot.slane %v442, %v449
      %v451 = vcombine.high %v450, %v450
      %vm452 = vcmask 31744
      %v454 = vsel %vm452, %v441, 0
      %vm456 = vcmask 1041408
      %v458 = vsel %vm456, %v450, 0
      %v461 = vsel %vm456, %v451, 0
      %463 = vmatprep.subr.bf16.mxu0 %v461
      %464 = vmatpush1.bf16.msra.mxu0 %v458
      %465 = vmatprep.subr.bf16.mxu0 0
      %466 = vmatpush1.bf16.msra.mxu0 0
      %467 = vmatprep.subr.bf16.mxu0 0
      %468 = vmatpush1.bf16.msra.mxu0 0
      %469 = vmatprep.subr.bf16.mxu0 0
      %470 = vmatpush1.bf16.msra.mxu0 0
      %471 = vmatprep.subr.bf16.mxu0 0
      %472 = vmatpush1.bf16.msra.mxu0 0
      %473 = vmatprep.subr.bf16.mxu0 0
      %474 = vmatpush1.bf16.msra.mxu0 0
      %475 = vmatprep.subr.bf16.mxu0 0
      %476 = vmatpush1.bf16.msra.mxu0 0
      %477 = vmatprep.subr.bf16.mxu0 0
      %478 = vmatpush1.bf16.msra.mxu0 0
      %479 = vmatprep.subr.bf16.mxu0 0
      %480 = vmatpush1.bf16.msra.mxu0 0
      %481 = vmatprep.subr.bf16.mxu0 0
      %482 = vmatpush1.bf16.msra.mxu0 0
      %483 = vmatprep.subr.bf16.mxu0 0
      %484 = vmatpush1.bf16.msra.mxu0 0
      %485 = vmatprep.subr.bf16.mxu0 0
      %486 = vmatpush1.bf16.msra.mxu0 0
      %487 = vmatprep.subr.bf16.mxu0 0
      %488 = vmatpush1.bf16.msra.mxu0 0
      %489 = vmatprep.subr.bf16.mxu0 0
      %490 = vmatpush1.bf16.msra.mxu0 0
      %491 = vmatprep.subr.bf16.mxu0 0
      %492 = vmatpush1.bf16.msra.mxu0 0
      %493 = vmatprep.subr.bf16.mxu0 0
      %494 = vmatpush1.bf16.msra.mxu0 0
      %495 = vmatprep.mubr.bf16.mxu0 0
      %496 = vmatmul.mubr.bf16.gmra.mrb[0].mxu0 %v454
      %v497 = vpop.f32.mrb[0].mxu0
      %v498 = vadd.f32 0.0, %v497
      %v499 = vpop.f32.mrb[0].mxu0
      %v500 = vadd.f32 0.0, %v499
      %v501 = vpop.f32.mrb[0].mxu0
      %v502 = vpop.f32.mrb[0].mxu0
      %503 = vdwg.mxu0
      %v504 = vadd.f32 %v435, %v498
      %v505 = vadd.f32 %v437, %v500
      %v506 = vld [vmem:[%s5] sm:$0xff]
      %508 = vset.pattern.permute.xlu0 0
      %509 = vperm.xlu0 %508, %v506
      %v510 = vpop.permute.xlu0 %509
      %v512 = vadd.f32 %v504, %v510
      %v513 = vadd.f32 %v505, %v510
      %514 = vst [vmem:[%s325] sm:$0xff] %v512
      %515 = vst [vmem:[%s325 + $0x8] sm:$0xff] %v513
      %s516 = smul.u32 2, %s22
      %p517 = scmp.lt.s32.totalorder %s21, 1
      %s518 = scalar_select %p517, %s21, 1
      %p519 = scmp.lt.s32.totalorder %s516, 1
      %s520 = scalar_select %p519, %s516, 1
      %s521 = smul.addr %s518, 2
      %s522 = sadd.s32 %s520, %s521
      %s523 = smul.addr %s522, 8
      %s524 = scalar_lea.vmem %s6, %s523
      // Predicated region
      $region45: #{sequential_with_t_forward.5} parent=43 // pred_check
        %p525 = pneg %p189
      $region46: #{sequential_with_t_forward.5} parent=43 // pred_check_branch
        %527 = sbr.rel (%p525) target = $region48
      $region47: #{sequential_with_t_forward.5} parent=43 // pred_region
        %s528 = smul.u32 2, %s22
      $region48: #{sequential_with_t_forward.5} parent=43 // pred_fallthru
        _
    $region44: #{sequential_with_t_forward.5} parent=5 // pred_fallthru
      _
    %p529 = scmp.le.s32.totalorder 2, %s12
    // Predicated region
    $region49: #{sequential_with_t_forward.5} parent=5 // pred_check
      %p530 = pneg %p529
    $region50: #{sequential_with_t_forward.5} parent=5 // pred_check_branch
      %532 = sbr.rel (%p530) target = $region52
    $region51: #{sequential_with_t_forward.5} parent=5 // pred_region
      %s533 = ssub.s32 %s12, 2
      // Predicated region
      $region53: #{sequential_with_t_forward.5} parent=51 // pred_check
        %p534 = pneg %p195
      $region54: #{sequential_with_t_forward.5} parent=51 // pred_check_branch
        %536 = sbr.rel (%p534) target = $region56
      $region55: #{sequential_with_t_forward.5} parent=51 // pred_region
        %s537 = smul.u32 2, %s24
        %p538 = scmp.lt.s32.totalorder %s23, 1
        %s539 = scalar_select %p538, %s23, 1
        %p540 = scmp.lt.s32.totalorder %s537, 1
        %s541 = scalar_select %p540, %s537, 1
        %s542 = smul.addr %s539, 2
        %s543 = sadd.s32 %s541, %s542
        %s544 = smul.addr %s543, 8
        %s545 = scalar_lea.vmem %s6, %s544
      $region56: #{sequential_with_t_forward.5} parent=51 // pred_fallthru
        _
    $region52: #{sequential_with_t_forward.5} parent=5 // pred_fallthru
      _
  $region6: #{sequential_with_t_forward.5} parent=0 // loop_footer
    %s16 = sadd.s32 1, %s12
  $region7: #{sequential_with_t_forward.5} parent=0 // loop_footer_branch
    %11 = sbr.rel target = $region3
  $region8: #{sequential_with_t_forward.5} parent=0 // loop_exit
    _

// kernel: sequential_with_t_forward.6
$region0: #{sequential_with_t_forward.6}
  #allocation0 [shape = 'u32[]', space=smem, size = 0x4, offset = 0x4, fixed_abs, tag = 'smem constant byte address 0x4 - core index']
  #allocation1 [shape = 'u32[144,128]{1,0:T(1,128)}', space=vmem, size = 0x12000, scoped, tag = 'internal scratch']
  %s0 = inlined_call_operand.vmem [shape: bf16[2,72,256], index: 0, kind: input, shape index: {}]
  %s1 = inlined_call_operand.vmem [shape: bf16[8,72], index: 1, kind: input, shape index: {}]
  %s2 = inlined_call_operand.vmem [shape: f32[8,1], index: 2, kind: input, shape index: {}]
  %s3 = inlined_call_operand.vmem [shape: f32[2,8,1], index: 3, kind: input, shape index: {}]
  %s4 = inlined_call_operand.vmem [shape: f32[2,8,1], index: 4, kind: input, shape index: {}]
  %s5 = inlined_call_operand.vmem [shape: f32[2,8,256], index: 5, kind: output, shape index: {}]
  %s6 = sld [smem:[#allocation0]]
  $region53: #{sequential_with_t_forward.6} parent=0
    _
  %s8 = ssub.s32 1, %s6
  %s9 = scalar_select 0, %s8, %s6
  loop: start=0, step=1, limit=4
  $region2: #{sequential_with_t_forward.6} parent=0 // loop_pre_header
    _
  $region3: #{sequential_with_t_forward.6} parent=0 // loop_header
    %s11 = sphi 0, %s15
    %p12 = scmp.ge.s32.totalorder %s11, 4
    %s18 = sphi 0, %s30
    %s19 = sphi 0, %s26
    %s20 = sphi 0, %s18
    %s21 = sphi 0, %s19
    %s22 = sphi 0, %s20
    %s23 = sphi 0, %s21
    %s35 = sphi 0, %s37
    %s38 = sphi 0, %s35
    %s39 = sphi 0, %s38
    %s55 = sphi 0, %s39
    %s59 = sphi 0, %s59
    %s61 = sphi 0, %s59
    %s62 = sphi 0, %s61
    %s76 = sphi 0, %s62
    %s80 = sphi 0, %s80
    %s82 = sphi 0, %s80
    %s83 = sphi 0, %s82
    %s97 = sphi 0, %s83
    %s103 = sphi 0, %s105
    %s106 = sphi 0, %s103
    %s107 = sphi 0, %s106
    %s123 = sphi 0, %s107
    %s129 = sphi 0, %s131
    %s132 = sphi 0, %s129
    %s133 = sphi 0, %s132
    %s149 = sphi 0, %s133
    %s157 = sphi 0, %s159
    %s160 = sphi 0, %s157
    %s161 = sphi 0, %s160
    %s177 = sphi 0, %s161
  $region4: #{sequential_with_t_forward.6} parent=0 // loop_header_branch
    %14 = sbr.rel (%p12) target = $region8
  $region5: #{sequential_with_t_forward.6} parent=0 // loop_body
    %s16 = ssub.s32 %s11, 1
    %s17 = ssub.s32 %s11, 2
    %s24 = sadd.s32 1, %s19
    %p25 = scmp.ge.s32.totalorder %s24, 1
    %s26 = scalar_select %p25, 0, %s24
    %s27 = sadd.s32 1, %s18
    %s28 = scalar_select %p25, %s27, %s18
    %p29 = scmp.ge.s32.totalorder %s28, 2
    %s30 = scalar_select %p29, 0, %s28
    %s31 = ssub.s32 %s18, %s30
    %s32 = ssub.s32 %s19, %s26
    %s33 = sor.u32 %s31, %s32
    %p34 = scmp.eq.s32.totalorder %s33, 0
    %s36 = sadd.s32 %s35, 1
    %s37 = scalar_select %p34, %s35, %s36
    %p40 = pneg %p34
    %p41 = scmp.eq.s32.totalorder %s11, 1
    %p42 = por %p40, %p41
    %p43 = scmp.ne.s32.totalorder %s35, %s38
    %p44 = scmp.eq.s32.totalorder %s11, 0
    %p45 = por %p43, %p44
    %p46 = scmp.ne.s32.totalorder %s35, %s38
    %p47 = scmp.eq.s32.totalorder %s16, 1
    %p48 = por %p46, %p47
    %p49 = scmp.ne.s32.totalorder %s38, %s39
    %p50 = scmp.eq.s32.totalorder %s16, 0
    %p51 = por %p49, %p50
    %p52 = scmp.ne.s32.totalorder %s38, %s39
    %p53 = scmp.eq.s32.totalorder %s17, 1
    %p54 = por %p52, %p53
    %p56 = scmp.ne.s32.totalorder %s39, %s55
    %p57 = scmp.eq.s32.totalorder %s17, 0
    %p58 = por %p56, %p57
    %s60 = sadd.s32 %s59, 1
    %p63 = scmp.eq.s32.totalorder %s11, 1
    %p64 = scmp.ne.s32.totalorder %s59, %s61
    %p65 = scmp.eq.s32.totalorder %s11, 0
    %p66 = por %p64, %p65
    %p67 = scmp.ne.s32.totalorder %s59, %s61
    %p68 = scmp.eq.s32.totalorder %s16, 1
    %p69 = por %p67, %p68
    %p70 = scmp.ne.s32.totalorder %s61, %s62
    %p71 = scmp.eq.s32.totalorder %s16, 0
    %p72 = por %p70, %p71
    %p73 = scmp.ne.s32.totalorder %s61, %s62
    %p74 = scmp.eq.s32.totalorder %s17, 1
    %p75 = por %p73, %p74
    %p77 = scmp.ne.s32.totalorder %s62, %s76
    %p78 = scmp.eq.s32.totalorder %s17, 0
    %p79 = por %p77, %p78
    %s81 = sadd.s32 %s80, 1
    %p84 = scmp.eq.s32.totalorder %s11, 1
    %p85 = scmp.ne.s32.totalorder %s80, %s82
    %p86 = scmp.eq.s32.totalorder %s11, 0
    %p87 = por %p85, %p86
    %p88 = scmp.ne.s32.totalorder %s80, %s82
    %p89 = scmp.eq.s32.totalorder %s16, 1
    %p90 = por %p88, %p89
    %p91 = scmp.ne.s32.totalorder %s82, %s83
    %p92 = scmp.eq.s32.totalorder %s16, 0
    %p93 = por %p91, %p92
    %p94 = scmp.ne.s32.totalorder %s82, %s83
    %p95 = scmp.eq.s32.totalorder %s17, 1
    %p96 = por %p94, %p95
    %p98 = scmp.ne.s32.totalorder %s83, %s97
    %p99 = scmp.eq.s32.totalorder %s17, 0
    %p100 = por %p98, %p99
    %s101 = ssub.s32 %s18, %s30
    %p102 = scmp.eq.s32.totalorder %s101, 0
    %s104 = sadd.s32 %s103, 1
    %s105 = scalar_select %p102, %s103, %s104
    %p108 = pneg %p102
    %p109 = scmp.eq.s32.totalorder %s11, 1
    %p110 = por %p108, %p109
    %p111 = scmp.ne.s32.totalorder %s103, %s106
    %p112 = scmp.eq.s32.totalorder %s11, 0
    %p113 = por %p111, %p112
    %p114 = scmp.ne.s32.totalorder %s103, %s106
    %p115 = scmp.eq.s32.totalorder %s16, 1
    %p116 = por %p114, %p115
    %p117 = scmp.ne.s32.totalorder %s106, %s107
    %p118 = scmp.eq.s32.totalorder %s16, 0
    %p119 = por %p117, %p118
    %p120 = scmp.ne.s32.totalorder %s106, %s107
    %p121 = scmp.eq.s32.totalorder %s17, 1
    %p122 = por %p120, %p121
    %p124 = scmp.ne.s32.totalorder %s107, %s123
    %p125 = scmp.eq.s32.totalorder %s17, 0
    %p126 = por %p124, %p125
    %s127 = ssub.s32 %s18, %s30
    %p128 = scmp.eq.s32.totalorder %s127, 0
    %s130 = sadd.s32 %s129, 1
    %s131 = scalar_select %p128, %s129, %s130
    %p134 = pneg %p128
    %p135 = scmp.eq.s32.totalorder %s11, 1
    %p136 = por %p134, %p135
    %p137 = scmp.ne.s32.totalorder %s129, %s132
    %p138 = scmp.eq.s32.totalorder %s11, 0
    %p139 = por %p137, %p138
    %p140 = scmp.ne.s32.totalorder %s129, %s132
    %p141 = scmp.eq.s32.totalorder %s16, 1
    %p142 = por %p140, %p141
    %p143 = scmp.ne.s32.totalorder %s132, %s133
    %p144 = scmp.eq.s32.totalorder %s16, 0
    %p145 = por %p143, %p144
    %p146 = scmp.ne.s32.totalorder %s132, %s133
    %p147 = scmp.eq.s32.totalorder %s17, 1
    %p148 = por %p146, %p147
    %p150 = scmp.ne.s32.totalorder %s133, %s149
    %p151 = scmp.eq.s32.totalorder %s17, 0
    %p152 = por %p150, %p151
    %s153 = ssub.s32 %s18, %s30
    %s154 = ssub.s32 %s19, %s26
    %s155 = sor.u32 %s153, %s154
    %p156 = scmp.eq.s32.totalorder %s155, 0
    %s158 = sadd.s32 %s157, 1
    %s159 = scalar_select %p156, %s157, %s158
    %p162 = pneg %p156
    %p163 = scmp.eq.s32.totalorder %s11, 1
    %p164 = por %p162, %p163
    %p165 = scmp.ne.s32.totalorder %s157, %s160
    %p166 = scmp.eq.s32.totalorder %s11, 0
    %p167 = por %p165, %p166
    %p168 = scmp.ne.s32.totalorder %s157, %s160
    %p169 = scmp.eq.s32.totalorder %s16, 1
    %p170 = por %p168, %p169
    %p171 = scmp.ne.s32.totalorder %s160, %s161
    %p172 = scmp.eq.s32.totalorder %s16, 0
    %p173 = por %p171, %p172
    %p174 = scmp.ne.s32.totalorder %s160, %s161
    %p175 = scmp.eq.s32.totalorder %s17, 1
    %p176 = por %p174, %p175
    %p178 = scmp.ne.s32.totalorder %s161, %s177
    %p179 = scmp.eq.s32.totalorder %s17, 0
    %p180 = por %p178, %p179
    %p181 = scmp.le.s32.totalorder 1, %s11
    %p182 = scmp.lt.s32.totalorder %s11, 3
    %p183 = pnand %p181, %p182
    %p184 = pneg %p183
    // Predicated region
    $region9: #{sequential_with_t_forward.6} parent=5 // pred_check
      _
    $region10: #{sequential_with_t_forward.6} parent=5 // pred_check_branch
      %186 = sbr.rel (%p183) target = $region12
    $region11: #{sequential_with_t_forward.6} parent=5 // pred_region
      %s187 = ssub.s32 %s11, 1
      // Predicated region
      $region13: #{sequential_with_t_forward.6} parent=11 // pred_check
        %p188 = pneg %p72
      $region14: #{sequential_with_t_forward.6} parent=11 // pred_check_branch
        %190 = sbr.rel (%p188) target = $region16
      $region15: #{sequential_with_t_forward.6} parent=11 // pred_region
        _
      $region16: #{sequential_with_t_forward.6} parent=11 // pred_fallthru
        _
      // Predicated region
      $region17: #{sequential_with_t_forward.6} parent=11 // pred_check
        %p191 = pneg %p93
      $region18: #{sequential_with_t_forward.6} parent=11 // pred_check_branch
        %193 = sbr.rel (%p191) target = $region20
      $region19: #{sequential_with_t_forward.6} parent=11 // pred_region
        _
      $region20: #{sequential_with_t_forward.6} parent=11 // pred_fallthru
        _
    $region12: #{sequential_with_t_forward.6} parent=5 // pred_fallthru
      _
    %p194 = scmp.lt.s32.totalorder %s11, 2
    // Predicated region
    $region21: #{sequential_with_t_forward.6} parent=5 // pred_check
      %p195 = pneg %p194
    $region22: #{sequential_with_t_forward.6} parent=5 // pred_check_branch
      %197 = sbr.rel (%p195) target = $region24
    $region23: #{sequential_with_t_forward.6} parent=5 // pred_region
      // Predicated region
      $region25: #{sequential_with_t_forward.6} parent=23 // pred_check
        %p198 = pneg %p45
      $region26: #{sequential_with_t_forward.6} parent=23 // pred_check_branch
        %200 = sbr.rel (%p198) target = $region28
      $region27: #{sequential_with_t_forward.6} parent=23 // pred_region
        %s201 = smul.u32 2, %s19
        %p202 = scmp.lt.s32.totalorder %s18, 1
        %s203 = scalar_select %p202, %s18, 1
        %p204 = scmp.lt.s32.totalorder %s201, 1
        %s205 = scalar_select %p204, %s201, 1
        %s206 = smul.addr %s203, 18
        %s207 = sadd.s32 %s205, %s206
        %s208 = smul.addr %s207, 4
        %s209 = scalar_lea.vmem %s0, %s208
        %s210 = smul.u32 2, %s19
      $region28: #{sequential_with_t_forward.6} parent=23 // pred_fallthru
        _
      // Predicated region
      $region29: #{sequential_with_t_forward.6} parent=23 // pred_check
        %p211 = pneg %p113
      $region30: #{sequential_with_t_forward.6} parent=23 // pred_check_branch
        %213 = sbr.rel (%p211) target = $region32
      $region31: #{sequential_with_t_forward.6} parent=23 // pred_region
        %p214 = scmp.lt.s32.totalorder %s18, 1
        %s215 = scalar_select %p214, %s18, 1
        %s216 = smul.addr %s215, 8
        %s217 = scalar_lea.vmem %s3, %s216
      $region32: #{sequential_with_t_forward.6} parent=23 // pred_fallthru
        _
      // Predicated region
      $region33: #{sequential_with_t_forward.6} parent=23 // pred_check
        %p218 = pneg %p139
      $region34: #{sequential_with_t_forward.6} parent=23 // pred_check_branch
        %220 = sbr.rel (%p218) target = $region36
      $region35: #{sequential_with_t_forward.6} parent=23 // pred_region
        %p221 = scmp.lt.s32.totalorder %s18, 1
        %s222 = scalar_select %p221, %s18, 1
        %s223 = smul.addr %s222, 8
        %s224 = scalar_lea.vmem %s4, %s223
      $region36: #{sequential_with_t_forward.6} parent=23 // pred_fallthru
        _
    $region24: #{sequential_with_t_forward.6} parent=5 // pred_fallthru
      _
    %p225 = scmp.le.s32.totalorder 1, %s11
    %p226 = scmp.lt.s32.totalorder %s11, 3
    %p227 = pnand %p225, %p226
    %p228 = pneg %p227
    // Predicated region
    $region37: #{sequential_with_t_forward.6} parent=5 // pred_check
      _
    $region38: #{sequential_with_t_forward.6} parent=5 // pred_check_branch
      %230 = sbr.rel (%p227) target = $region40
    $region39: #{sequential_with_t_forward.6} parent=5 // pred_region
      %s231 = ssub.s32 %s11, 1
      %s232 = smul.u32 2, %s21
      %p233 = scmp.lt.s32.totalorder %s20, 1
      %s234 = scalar_select %p233, %s20, 1
      %p235 = scmp.lt.s32.totalorder %s232, 1
      %s236 = scalar_select %p235, %s232, 1
      %s237 = smul.addr %s234, 18
      %s238 = sadd.s32 %s236, %s237
      %s239 = smul.addr %s238, 4
      %s240 = scalar_lea.vmem %s0, %s239
      %p241 = pneg %p51
      %p242 = pneg %p48
      %p243 = pneg %p72
      %p244 = pneg %p69
      %p245 = pneg %p93
      %p246 = pneg %p90
      %p247 = scmp.lt.s32.totalorder %s20, 1
      %s248 = scalar_select %p247, %s20, 1
      %s249 = smul.addr %s248, 8
      %s250 = scalar_lea.vmem %s3, %s249
      %p251 = pneg %p119
      %p252 = pneg %p116
      %p253 = scmp.lt.s32.totalorder %s20, 1
      %s254 = scalar_select %p253, %s20, 1
      %s255 = smul.addr %s254, 8
      %s256 = scalar_lea.vmem %s4, %s255
      %p257 = pneg %p145
      %p258 = pneg %p142
      %p259 = pneg %p173
      %p260 = pneg %p170
      %s261 = smul.u32 2, %s21
      %p262 = scmp.lt.s32.totalorder %s20, 1
      %s263 = scalar_select %p262, %s20, 1
      %p264 = scmp.lt.s32.totalorder %s261, 1
      %s265 = scalar_select %p264, %s261, 1
      %s266 = smul.addr %s263, 2
      %s267 = sadd.s32 %s265, %s266
      %s268 = smul.addr %s267, 8
      %s269 = scalar_lea.vmem %s5, %s268
      %s270 = smul.u32 2, %s21
      %p271 = scmp.lt.s32.totalorder %s20, 1
      %s272 = scalar_select %p271, %s20, 1
      %p273 = scmp.lt.s32.totalorder %s270, 1
      %s274 = scalar_select %p273, %s270, 1
      %s275 = smul.addr %s272, 18
      %s276 = sadd.s32 %s274, %s275
      %s277 = smul.addr %s276, 4
      %s278 = scalar_lea.vmem %s0, %s277
      %s279 = smul.u32 2, %s21
      %p280 = scmp.lt.s32.totalorder %s20, 1
      %s281 = scalar_select %p280, %s20, 1
      %s282 = smul.addr %s281, 8
      %s283 = scalar_lea.vmem %s3, %s282
      %p284 = scmp.lt.s32.totalorder %s20, 1
      %s285 = scalar_select %p284, %s20, 1
      %s286 = smul.addr %s285, 8
      %s287 = scalar_lea.vmem %s4, %s286
      %s288 = smul.u32 2, %s21
      %p289 = scmp.lt.s32.totalorder %s20, 1
      %s290 = scalar_select %p289, %s20, 1
      %p291 = scmp.lt.s32.totalorder %s288, 1
      %s292 = scalar_select %p291, %s288, 1
      %s293 = smul.addr %s290, 2
      %s294 = sadd.s32 %s292, %s293
      %s295 = smul.addr %s294, 8
      %s296 = scalar_lea.vmem %s5, %s295
      %s297 = smul.u32 2, %s21
      %v299 = vld [vmem:[%s1] sm:$0xf]
      %v300 = vld [vmem:[%s278] sm:$0xff]
      %v301 = vld [vmem:[%s278 + $0x8] sm:$0xff]
      %v302 = vld [vmem:[%s278 + $0x10] sm:$0xff]
      %v303 = vld [vmem:[%s278 + $0x18] sm:$0xff]
      %v304 = vld [vmem:[%s278 + $0x20] sm:$0xff]
      %v305 = vld [vmem:[%s278 + $0x28] sm:$0xff]
      %v306 = vld [vmem:[%s278 + $0x30] sm:$0xff]
      %v307 = vld [vmem:[%s278 + $0x38] sm:$0xff]
      %v308 = vld [vmem:[%s278 + $0x40] sm:$0xff]
      %v309 = vld [vmem:[%s2] sm:$0xff]
      %311 = vset.pattern.permute.xlu0 0
      %312 = vperm.xlu0 %311, %v309
      %v313 = vpop.permute.xlu0 %312
      %v324 = vunpack.c.l.b16 %v300
      %v325 = vunpack.c.h.b16 %v300
      %v326 = vunpack.c.l.b16 %v301
      %v327 = vunpack.c.h.b16 %v301
      %v328 = vunpack.c.l.b16 %v302
      %v329 = vunpack.c.h.b16 %v302
      %v330 = vunpack.c.l.b16 %v303
      %v331 = vunpack.c.h.b16 %v303
      %v332 = vunpack.c.l.b16 %v304
      %v333 = vunpack.c.h.b16 %v304
      %v334 = vunpack.c.l.b16 %v305
      %v335 = vunpack.c.h.b16 %v305
      %v336 = vunpack.c.l.b16 %v306
      %v337 = vunpack.c.h.b16 %v306
      %v338 = vunpack.c.l.b16 %v307
      %v339 = vunpack.c.h.b16 %v307
      %v340 = vunpack.c.l.b16 %v308
      %v341 = vunpack.c.h.b16 %v308
      %v342 = vpack.c.b16 %v326, %v324
      %v343 = vpack.c.b16 %v327, %v325
      %v344 = vpack.c.b16 %v330, %v328
      %v345 = vpack.c.b16 %v331, %v329
      %v346 = vpack.c.b16 %v334, %v332
      %v347 = vpack.c.b16 %v335, %v333
      %v348 = vpack.c.b16 %v338, %v336
      %v349 = vpack.c.b16 %v339, %v337
      %v350 = vpack.c.b16 %v340, %v340
      %v351 = vpack.c.b16 %v341, %v341
      %vm360 = vcmask 588800
      %v362 = vsel %vm360, %v299, 0
      %vm364 = vcmask 1043456
      %v366 = vsel %vm364, %v350, 0
      %v369 = vsel %vm364, %v351, 0
      %371 = vmatprep.subr.bf16.mxu0 %v343
      %372 = vmatpush1.bf16.msra.mxu0 %v342
      %373 = vmatprep.subr.bf16.mxu0 %v345
      %374 = vmatpush1.bf16.msra.mxu0 %v344
      %375 = vmatprep.subr.bf16.mxu0 %v347
      %376 = vmatpush1.bf16.msra.mxu0 %v346
      %377 = vmatprep.subr.bf16.mxu0 %v349
      %378 = vmatpush1.bf16.msra.mxu0 %v348
      %379 = vmatprep.subr.bf16.mxu0 %v369
      %380 = vmatpush1.bf16.msra.mxu0 %v366
      %381 = vmatprep.subr.bf16.mxu0 0
      %382 = vmatpush1.bf16.msra.mxu0 0
      %383 = vmatprep.subr.bf16.mxu0 0
      %384 = vmatpush1.bf16.msra.mxu0 0
      %385 = vmatprep.subr.bf16.mxu0 0
      %386 = vmatpush1.bf16.msra.mxu0 0
      %387 = vmatprep.subr.bf16.mxu0 0
      %388 = vmatpush1.bf16.msra.mxu0 0
      %389 = vmatprep.subr.bf16.mxu0 0
      %390 = vmatpush1.bf16.msra.mxu0 0
      %391 = vmatprep.subr.bf16.mxu0 0
      %392 = vmatpush1.bf16.msra.mxu0 0
      %393 = vmatprep.subr.bf16.mxu0 0
      %394 = vmatpush1.bf16.msra.mxu0 0
      %395 = vmatprep.subr.bf16.mxu0 0
      %396 = vmatpush1.bf16.msra.mxu0 0
      %397 = vmatprep.subr.bf16.mxu0 0
      %398 = vmatpush1.bf16.msra.mxu0 0
      %399 = vmatprep.subr.bf16.mxu0 0
      %400 = vmatpush1.bf16.msra.mxu0 0
      %401 = vmatprep.subr.bf16.mxu0 0
      %402 = vmatpush1.bf16.msra.mxu0 0
      %403 = vmatprep.mubr.bf16.mxu0 0
      %404 = vmatmul.mubr.bf16.gmra.mrb[0].mxu0 %v362
      %v405 = vpop.f32.mrb[0].mxu0
      %v406 = vadd.f32 %v313, %v405
      %v407 = vpop.f32.mrb[0].mxu0
      %v408 = vadd.f32 %v313, %v407
      %v409 = vpop.f32.mrb[0].mxu0
      %v410 = vpop.f32.mrb[0].mxu0
      %411 = vdwg.mxu0
      %v412 = vld [vmem:[%s283] sm:$0xff]
      %414 = vset.pattern.permute.xlu0 0
      %415 = vperm.xlu0 %414, %v412
      %v416 = vpop.permute.xlu0 %415
      %v418 = vmul.f32 %v406, %v416
      %v419 = vmul.f32 %v408, %v416
      %v420 = vld [vmem:[%s287] sm:$0xff]
      %422 = vset.pattern.permute.xlu0 0
      %423 = vperm.xlu0 %422, %v420
      %v424 = vpop.permute.xlu0 %423
      %v426 = vadd.f32 %v418, %v424
      %v427 = vadd.f32 %v419, %v424
      %428 = vst [vmem:[%s296] sm:$0xff] %v426
      %429 = vst [vmem:[%s296 + $0x8] sm:$0xff] %v427
      %s430 = smul.u32 2, %s21
      %p431 = scmp.lt.s32.totalorder %s20, 1
      %s432 = scalar_select %p431, %s20, 1
      %p433 = scmp.lt.s32.totalorder %s430, 1
      %s434 = scalar_select %p433, %s430, 1
      %s435 = smul.addr %s432, 2
      %s436 = sadd.s32 %s434, %s435
      %s437 = smul.addr %s436, 8
      %s438 = scalar_lea.vmem %s5, %s437
      // Predicated region
      $region41: #{sequential_with_t_forward.6} parent=39 // pred_check
        %p439 = pneg %p170
      $region42: #{sequential_with_t_forward.6} parent=39 // pred_check_branch
        %441 = sbr.rel (%p439) target = $region44
      $region43: #{sequential_with_t_forward.6} parent=39 // pred_region
        %s442 = smul.u32 2, %s21
      $region44: #{sequential_with_t_forward.6} parent=39 // pred_fallthru
        _
    $region40: #{sequential_with_t_forward.6} parent=5 // pred_fallthru
      _
    %p443 = scmp.le.s32.totalorder 2, %s11
    // Predicated region
    $region45: #{sequential_with_t_forward.6} parent=5 // pred_check
      %p444 = pneg %p443
    $region46: #{sequential_with_t_forward.6} parent=5 // pred_check_branch
      %446 = sbr.rel (%p444) target = $region48
    $region47: #{sequential_with_t_forward.6} parent=5 // pred_region
      %s447 = ssub.s32 %s11, 2
      // Predicated region
      $region49: #{sequential_with_t_forward.6} parent=47 // pred_check
        %p448 = pneg %p176
      $region50: #{sequential_with_t_forward.6} parent=47 // pred_check_branch
        %450 = sbr.rel (%p448) target = $region52
      $region51: #{sequential_with_t_forward.6} parent=47 // pred_region
        %s451 = smul.u32 2, %s23
        %p452 = scmp.lt.s32.totalorder %s22, 1
        %s453 = scalar_select %p452, %s22, 1
        %p454 = scmp.lt.s32.totalorder %s451, 1
        %s455 = scalar_select %p454, %s451, 1
        %s456 = smul.addr %s453, 2
        %s457 = sadd.s32 %s455, %s456
        %s458 = smul.addr %s457, 8
        %s459 = scalar_lea.vmem %s5, %s458
      $region52: #{sequential_with_t_forward.6} parent=47 // pred_fallthru
        _
    $region48: #{sequential_with_t_forward.6} parent=5 // pred_fallthru
      _
  $region6: #{sequential_with_t_forward.6} parent=0 // loop_footer
    %s15 = sadd.s32 1, %s11
  $region7: #{sequential_with_t_forward.6} parent=0 // loop_footer_branch
    %10 = sbr.rel target = $region3
  $region8: #{sequential_with_t_forward.6} parent=0 // loop_exit
    _

// kernel: sequential_with_t_forward.7
$region0: #{sequential_with_t_forward.7}
  #allocation0 [shape = 'u32[]', space=smem, size = 0x4, offset = 0x4, fixed_abs, tag = 'smem constant byte address 0x4 - core index']
  #allocation1 [shape = 'u32[144,128]{1,0:T(1,128)}', space=vmem, size = 0x12000, scoped, tag = 'internal scratch']
  %s0 = inlined_call_operand.vmem [shape: bf16[2,72,256], index: 0, kind: input, shape index: {}]
  %s1 = inlined_call_operand.vmem [shape: bf16[8,72], index: 1, kind: input, shape index: {}]
  %s2 = inlined_call_operand.vmem [shape: f32[8,1], index: 2, kind: input, shape index: {}]
  %s3 = inlined_call_operand.vmem [shape: f32[2,8,256], index: 3, kind: input, shape index: {}]
  %s4 = inlined_call_operand.vmem [shape: f32[2,8,256], index: 4, kind: output, shape index: {}]
  %s5 = sld [smem:[#allocation0]]
  $region49: #{sequential_with_t_forward.7} parent=0
    _
  %s7 = ssub.s32 1, %s5
  %s8 = scalar_select 0, %s7, %s5
  loop: start=0, step=1, limit=4
  $region2: #{sequential_with_t_forward.7} parent=0 // loop_pre_header
    _
  $region3: #{sequential_with_t_forward.7} parent=0 // loop_header
    %s10 = sphi 0, %s14
    %p11 = scmp.ge.s32.totalorder %s10, 4
    %s17 = sphi 0, %s29
    %s18 = sphi 0, %s25
    %s19 = sphi 0, %s17
    %s20 = sphi 0, %s18
    %s21 = sphi 0, %s19
    %s22 = sphi 0, %s20
    %s34 = sphi 0, %s36
    %s37 = sphi 0, %s34
    %s38 = sphi 0, %s37
    %s54 = sphi 0, %s38
    %s58 = sphi 0, %s58
    %s60 = sphi 0, %s58
    %s61 = sphi 0, %s60
    %s75 = sphi 0, %s61
    %s79 = sphi 0, %s79
    %s81 = sphi 0, %s79
    %s82 = sphi 0, %s81
    %s96 = sphi 0, %s82
    %s104 = sphi 0, %s106
    %s107 = sphi 0, %s104
    %s108 = sphi 0, %s107
    %s124 = sphi 0, %s108
    %s132 = sphi 0, %s134
    %s135 = sphi 0, %s132
    %s136 = sphi 0, %s135
    %s152 = sphi 0, %s136
  $region4: #{sequential_with_t_forward.7} parent=0 // loop_header_branch
    %13 = sbr.rel (%p11) target = $region8
  $region5: #{sequential_with_t_forward.7} parent=0 // loop_body
    %s15 = ssub.s32 %s10, 1
    %s16 = ssub.s32 %s10, 2
    %s23 = sadd.s32 1, %s18
    %p24 = scmp.ge.s32.totalorder %s23, 1
    %s25 = scalar_select %p24, 0, %s23
    %s26 = sadd.s32 1, %s17
    %s27 = scalar_select %p24, %s26, %s17
    %p28 = scmp.ge.s32.totalorder %s27, 2
    %s29 = scalar_select %p28, 0, %s27
    %s30 = ssub.s32 %s17, %s29
    %s31 = ssub.s32 %s18, %s25
    %s32 = sor.u32 %s30, %s31
    %p33 = scmp.eq.s32.totalorder %s32, 0
    %s35 = sadd.s32 %s34, 1
    %s36 = scalar_select %p33, %s34, %s35
    %p39 = pneg %p33
    %p40 = scmp.eq.s32.totalorder %s10, 1
    %p41 = por %p39, %p40
    %p42 = scmp.ne.s32.totalorder %s34, %s37
    %p43 = scmp.eq.s32.totalorder %s10, 0
    %p44 = por %p42, %p43
    %p45 = scmp.ne.s32.totalorder %s34, %s37
    %p46 = scmp.eq.s32.totalorder %s15, 1
    %p47 = por %p45, %p46
    %p48 = scmp.ne.s32.totalorder %s37, %s38
    %p49 = scmp.eq.s32.totalorder %s15, 0
    %p50 = por %p48, %p49
    %p51 = scmp.ne.s32.totalorder %s37, %s38
    %p52 = scmp.eq.s32.totalorder %s16, 1
    %p53 = por %p51, %p52
    %p55 = scmp.ne.s32.totalorder %s38, %s54
    %p56 = scmp.eq.s32.totalorder %s16, 0
    %p57 = por %p55, %p56
    %s59 = sadd.s32 %s58, 1
    %p62 = scmp.eq.s32.totalorder %s10, 1
    %p63 = scmp.ne.s32.totalorder %s58, %s60
    %p64 = scmp.eq.s32.totalorder %s10, 0
    %p65 = por %p63, %p64
    %p66 = scmp.ne.s32.totalorder %s58, %s60
    %p67 = scmp.eq.s32.totalorder %s15, 1
    %p68 = por %p66, %p67
    %p69 = scmp.ne.s32.totalorder %s60, %s61
    %p70 = scmp.eq.s32.totalorder %s15, 0
    %p71 = por %p69, %p70
    %p72 = scmp.ne.s32.totalorder %s60, %s61
    %p73 = scmp.eq.s32.totalorder %s16, 1
    %p74 = por %p72, %p73
    %p76 = scmp.ne.s32.totalorder %s61, %s75
    %p77 = scmp.eq.s32.totalorder %s16, 0
    %p78 = por %p76, %p77
    %s80 = sadd.s32 %s79, 1
    %p83 = scmp.eq.s32.totalorder %s10, 1
    %p84 = scmp.ne.s32.totalorder %s79, %s81
    %p85 = scmp.eq.s32.totalorder %s10, 0
    %p86 = por %p84, %p85
    %p87 = scmp.ne.s32.totalorder %s79, %s81
    %p88 = scmp.eq.s32.totalorder %s15, 1
    %p89 = por %p87, %p88
    %p90 = scmp.ne.s32.totalorder %s81, %s82
    %p91 = scmp.eq.s32.totalorder %s15, 0
    %p92 = por %p90, %p91
    %p93 = scmp.ne.s32.totalorder %s81, %s82
    %p94 = scmp.eq.s32.totalorder %s16, 1
    %p95 = por %p93, %p94
    %p97 = scmp.ne.s32.totalorder %s82, %s96
    %p98 = scmp.eq.s32.totalorder %s16, 0
    %p99 = por %p97, %p98
    %s100 = ssub.s32 %s17, %s29
    %s101 = ssub.s32 %s18, %s25
    %s102 = sor.u32 %s100, %s101
    %p103 = scmp.eq.s32.totalorder %s102, 0
    %s105 = sadd.s32 %s104, 1
    %s106 = scalar_select %p103, %s104, %s105
    %p109 = pneg %p103
    %p110 = scmp.eq.s32.totalorder %s10, 1
    %p111 = por %p109, %p110
    %p112 = scmp.ne.s32.totalorder %s104, %s107
    %p113 = scmp.eq.s32.totalorder %s10, 0
    %p114 = por %p112, %p113
    %p115 = scmp.ne.s32.totalorder %s104, %s107
    %p116 = scmp.eq.s32.totalorder %s15, 1
    %p117 = por %p115, %p116
    %p118 = scmp.ne.s32.totalorder %s107, %s108
    %p119 = scmp.eq.s32.totalorder %s15, 0
    %p120 = por %p118, %p119
    %p121 = scmp.ne.s32.totalorder %s107, %s108
    %p122 = scmp.eq.s32.totalorder %s16, 1
    %p123 = por %p121, %p122
    %p125 = scmp.ne.s32.totalorder %s108, %s124
    %p126 = scmp.eq.s32.totalorder %s16, 0
    %p127 = por %p125, %p126
    %s128 = ssub.s32 %s17, %s29
    %s129 = ssub.s32 %s18, %s25
    %s130 = sor.u32 %s128, %s129
    %p131 = scmp.eq.s32.totalorder %s130, 0
    %s133 = sadd.s32 %s132, 1
    %s134 = scalar_select %p131, %s132, %s133
    %p137 = pneg %p131
    %p138 = scmp.eq.s32.totalorder %s10, 1
    %p139 = por %p137, %p138
    %p140 = scmp.ne.s32.totalorder %s132, %s135
    %p141 = scmp.eq.s32.totalorder %s10, 0
    %p142 = por %p140, %p141
    %p143 = scmp.ne.s32.totalorder %s132, %s135
    %p144 = scmp.eq.s32.totalorder %s15, 1
    %p145 = por %p143, %p144
    %p146 = scmp.ne.s32.totalorder %s135, %s136
    %p147 = scmp.eq.s32.totalorder %s15, 0
    %p148 = por %p146, %p147
    %p149 = scmp.ne.s32.totalorder %s135, %s136
    %p150 = scmp.eq.s32.totalorder %s16, 1
    %p151 = por %p149, %p150
    %p153 = scmp.ne.s32.totalorder %s136, %s152
    %p154 = scmp.eq.s32.totalorder %s16, 0
    %p155 = por %p153, %p154
    %p156 = scmp.le.s32.totalorder 1, %s10
    %p157 = scmp.lt.s32.totalorder %s10, 3
    %p158 = pnand %p156, %p157
    %p159 = pneg %p158
    // Predicated region
    $region9: #{sequential_with_t_forward.7} parent=5 // pred_check
      _
    $region10: #{sequential_with_t_forward.7} parent=5 // pred_check_branch
      %161 = sbr.rel (%p158) target = $region12
    $region11: #{sequential_with_t_forward.7} parent=5 // pred_region
      %s162 = ssub.s32 %s10, 1
      // Predicated region
      $region13: #{sequential_with_t_forward.7} parent=11 // pred_check
        %p163 = pneg %p71
      $region14: #{sequential_with_t_forward.7} parent=11 // pred_check_branch
        %165 = sbr.rel (%p163) target = $region16
      $region15: #{sequential_with_t_forward.7} parent=11 // pred_region
        _
      $region16: #{sequential_with_t_forward.7} parent=11 // pred_fallthru
        _
      // Predicated region
      $region17: #{sequential_with_t_forward.7} parent=11 // pred_check
        %p166 = pneg %p92
      $region18: #{sequential_with_t_forward.7} parent=11 // pred_check_branch
        %168 = sbr.rel (%p166) target = $region20
      $region19: #{sequential_with_t_forward.7} parent=11 // pred_region
        _
      $region20: #{sequential_with_t_forward.7} parent=11 // pred_fallthru
        _
    $region12: #{sequential_with_t_forward.7} parent=5 // pred_fallthru
      _
    %p169 = scmp.lt.s32.totalorder %s10, 2
    // Predicated region
    $region21: #{sequential_with_t_forward.7} parent=5 // pred_check
      %p170 = pneg %p169
    $region22: #{sequential_with_t_forward.7} parent=5 // pred_check_branch
      %172 = sbr.rel (%p170) target = $region24
    $region23: #{sequential_with_t_forward.7} parent=5 // pred_region
      // Predicated region
      $region25: #{sequential_with_t_forward.7} parent=23 // pred_check
        %p173 = pneg %p44
      $region26: #{sequential_with_t_forward.7} parent=23 // pred_check_branch
        %175 = sbr.rel (%p173) target = $region28
      $region27: #{sequential_with_t_forward.7} parent=23 // pred_region
        %s176 = smul.u32 2, %s18
        %p177 = scmp.lt.s32.totalorder %s17, 1
        %s178 = scalar_select %p177, %s17, 1
        %p179 = scmp.lt.s32.totalorder %s176, 1
        %s180 = scalar_select %p179, %s176, 1
        %s181 = smul.addr %s178, 18
        %s182 = sadd.s32 %s180, %s181
        %s183 = smul.addr %s182, 4
        %s184 = scalar_lea.vmem %s0, %s183
        %s185 = smul.u32 2, %s18
      $region28: #{sequential_with_t_forward.7} parent=23 // pred_fallthru
        _
      // Predicated region
      $region29: #{sequential_with_t_forward.7} parent=23 // pred_check
        %p186 = pneg %p114
      $region30: #{sequential_with_t_forward.7} parent=23 // pred_check_branch
        %188 = sbr.rel (%p186) target = $region32
      $region31: #{sequential_with_t_forward.7} parent=23 // pred_region
        %s189 = smul.u32 2, %s18
        %p190 = scmp.lt.s32.totalorder %s17, 1
        %s191 = scalar_select %p190, %s17, 1
        %p192 = scmp.lt.s32.totalorder %s189, 1
        %s193 = scalar_select %p192, %s189, 1
        %s194 = smul.addr %s191, 2
        %s195 = sadd.s32 %s193, %s194
        %s196 = smul.addr %s195, 8
        %s197 = scalar_lea.vmem %s3, %s196
        %s198 = smul.u32 2, %s18
      $region32: #{sequential_with_t_forward.7} parent=23 // pred_fallthru
        _
    $region24: #{sequential_with_t_forward.7} parent=5 // pred_fallthru
      _
    %p199 = scmp.le.s32.totalorder 1, %s10
    %p200 = scmp.lt.s32.totalorder %s10, 3
    %p201 = pnand %p199, %p200
    %p202 = pneg %p201
    // Predicated region
    $region33: #{sequential_with_t_forward.7} parent=5 // pred_check
      _
    $region34: #{sequential_with_t_forward.7} parent=5 // pred_check_branch
      %204 = sbr.rel (%p201) target = $region36
    $region35: #{sequential_with_t_forward.7} parent=5 // pred_region
      %s205 = ssub.s32 %s10, 1
      %s206 = smul.u32 2, %s20
      %p207 = scmp.lt.s32.totalorder %s19, 1
      %s208 = scalar_select %p207, %s19, 1
      %p209 = scmp.lt.s32.totalorder %s206, 1
      %s210 = scalar_select %p209, %s206, 1
      %s211 = smul.addr %s208, 18
      %s212 = sadd.s32 %s210, %s211
      %s213 = smul.addr %s212, 4
      %s214 = scalar_lea.vmem %s0, %s213
      %p215 = pneg %p50
      %p216 = pneg %p47
      %p217 = pneg %p71
      %p218 = pneg %p68
      %p219 = pneg %p92
      %p220 = pneg %p89
      %s221 = smul.u32 2, %s20
      %p222 = scmp.lt.s32.totalorder %s19, 1
      %s223 = scalar_select %p222, %s19, 1
      %p224 = scmp.lt.s32.totalorder %s221, 1
      %s225 = scalar_select %p224, %s221, 1
      %s226 = smul.addr %s223, 2
      %s227 = sadd.s32 %s225, %s226
      %s228 = smul.addr %s227, 8
      %s229 = scalar_lea.vmem %s3, %s228
      %p230 = pneg %p120
      %p231 = pneg %p117
      %p232 = pneg %p148
      %p233 = pneg %p145
      %s234 = smul.u32 2, %s20
      %p235 = scmp.lt.s32.totalorder %s19, 1
      %s236 = scalar_select %p235, %s19, 1
      %p237 = scmp.lt.s32.totalorder %s234, 1
      %s238 = scalar_select %p237, %s234, 1
      %s239 = smul.addr %s236, 2
      %s240 = sadd.s32 %s238, %s239
      %s241 = smul.addr %s240, 8
      %s242 = scalar_lea.vmem %s4, %s241
      %s243 = smul.u32 2, %s20
      %p244 = scmp.lt.s32.totalorder %s19, 1
      %s245 = scalar_select %p244, %s19, 1
      %p246 = scmp.lt.s32.totalorder %s243, 1
      %s247 = scalar_select %p246, %s243, 1
      %s248 = smul.addr %s245, 18
      %s249 = sadd.s32 %s247, %s248
      %s250 = smul.addr %s249, 4
      %s251 = scalar_lea.vmem %s0, %s250
      %s252 = smul.u32 2, %s20
      %s253 = smul.u32 2, %s20
      %p254 = scmp.lt.s32.totalorder %s19, 1
      %s255 = scalar_select %p254, %s19, 1
      %p256 = scmp.lt.s32.totalorder %s253, 1
      %s257 = scalar_select %p256, %s253, 1
      %s258 = smul.addr %s255, 2
      %s259 = sadd.s32 %s257, %s258
      %s260 = smul.addr %s259, 8
      %s261 = scalar_lea.vmem %s3, %s260
      %s262 = smul.u32 2, %s20
      %s263 = smul.u32 2, %s20
      %p264 = scmp.lt.s32.totalorder %s19, 1
      %s265 = scalar_select %p264, %s19, 1
      %p266 = scmp.lt.s32.totalorder %s263, 1
      %s267 = scalar_select %p266, %s263, 1
      %s268 = smul.addr %s265, 2
      %s269 = sadd.s32 %s267, %s268
      %s270 = smul.addr %s269, 8
      %s271 = scalar_lea.vmem %s4, %s270
      %s272 = smul.u32 2, %s20
      %v274 = vld [vmem:[%s1] sm:$0xf]
      %v275 = vld [vmem:[%s251] sm:$0xff]
      %v276 = vld [vmem:[%s251 + $0x8] sm:$0xff]
      %v277 = vld [vmem:[%s251 + $0x10] sm:$0xff]
      %v278 = vld [vmem:[%s251 + $0x18] sm:$0xff]
      %v279 = vld [vmem:[%s251 + $0x20] sm:$0xff]
      %v280 = vld [vmem:[%s251 + $0x28] sm:$0xff]
      %v281 = vld [vmem:[%s251 + $0x30] sm:$0xff]
      %v282 = vld [vmem:[%s251 + $0x38] sm:$0xff]
      %v283 = vld [vmem:[%s251 + $0x40] sm:$0xff]
      %v284 = vld [vmem:[%s2] sm:$0xff]
      %286 = vset.pattern.permute.xlu0 0
      %287 = vperm.xlu0 %286, %v284
      %v288 = vpop.permute.xlu0 %287
      %v299 = vunpack.c.l.b16 %v275
      %v300 = vunpack.c.h.b16 %v275
      %v301 = vunpack.c.l.b16 %v276
      %v302 = vunpack.c.h.b16 %v276
      %v303 = vunpack.c.l.b16 %v277
      %v304 = vunpack.c.h.b16 %v277
      %v305 = vunpack.c.l.b16 %v278
      %v306 = vunpack.c.h.b16 %v278
      %v307 = vunpack.c.l.b16 %v279
      %v308 = vunpack.c.h.b16 %v279
      %v309 = vunpack.c.l.b16 %v280
      %v310 = vunpack.c.h.b16 %v280
      %v311 = vunpack.c.l.b16 %v281
      %v312 = vunpack.c.h.b16 %v281
      %v313 = vunpack.c.l.b16 %v282
      %v314 = vunpack.c.h.b16 %v282
      %v315 = vunpack.c.l.b16 %v283
      %v316 = vunpack.c.h.b16 %v283
      %v317 = vpack.c.b16 %v301, %v299
      %v318 = vpack.c.b16 %v302, %v300
      %v319 = vpack.c.b16 %v305, %v303
      %v320 = vpack.c.b16 %v306, %v304
      %v321 = vpack.c.b16 %v309, %v307
      %v322 = vpack.c.b16 %v310, %v308
      %v323 = vpack.c.b16 %v313, %v311
      %v324 = vpack.c.b16 %v314, %v312
      %v325 = vpack.c.b16 %v315, %v315
      %v326 = vpack.c.b16 %v316, %v316
      %vm335 = vcmask 588800
      %v337 = vsel %vm335, %v274, 0
      %vm339 = vcmask 1043456
      %v341 = vsel %vm339, %v325, 0
      %v344 = vsel %vm339, %v326, 0
      %346 = vmatprep.subr.bf16.mxu0 %v318
      %347 = vmatpush1.bf16.msra.mxu0 %v317
      %348 = vmatprep.subr.bf16.mxu0 %v320
      %349 = vmatpush1.bf16.msra.mxu0 %v319
      %350 = vmatprep.subr.bf16.mxu0 %v322
      %351 = vmatpush1.bf16.msra.mxu0 %v321
      %352 = vmatprep.subr.bf16.mxu0 %v324
      %353 = vmatpush1.bf16.msra.mxu0 %v323
      %354 = vmatprep.subr.bf16.mxu0 %v344
      %355 = vmatpush1.bf16.msra.mxu0 %v341
      %356 = vmatprep.subr.bf16.mxu0 0
      %357 = vmatpush1.bf16.msra.mxu0 0
      %358 = vmatprep.subr.bf16.mxu0 0
      %359 = vmatpush1.bf16.msra.mxu0 0
      %360 = vmatprep.subr.bf16.mxu0 0
      %361 = vmatpush1.bf16.msra.mxu0 0
      %362 = vmatprep.subr.bf16.mxu0 0
      %363 = vmatpush1.bf16.msra.mxu0 0
      %364 = vmatprep.subr.bf16.mxu0 0
      %365 = vmatpush1.bf16.msra.mxu0 0
      %366 = vmatprep.subr.bf16.mxu0 0
      %367 = vmatpush1.bf16.msra.mxu0 0
      %368 = vmatprep.subr.bf16.mxu0 0
      %369 = vmatpush1.bf16.msra.mxu0 0
      %370 = vmatprep.subr.bf16.mxu0 0
      %371 = vmatpush1.bf16.msra.mxu0 0
      %372 = vmatprep.subr.bf16.mxu0 0
      %373 = vmatpush1.bf16.msra.mxu0 0
      %374 = vmatprep.subr.bf16.mxu0 0
      %375 = vmatpush1.bf16.msra.mxu0 0
      %376 = vmatprep.subr.bf16.mxu0 0
      %377 = vmatpush1.bf16.msra.mxu0 0
      %378 = vmatprep.mubr.bf16.mxu0 0
      %379 = vmatmul.mubr.bf16.gmra.mrb[0].mxu0 %v337
      %v380 = vpop.f32.mrb[0].mxu0
      %v381 = vadd.f32 %v288, %v380
      %v382 = vpop.f32.mrb[0].mxu0
      %v383 = vadd.f32 %v288, %v382
      %v384 = vpop.f32.mrb[0].mxu0
      %v385 = vpop.f32.mrb[0].mxu0
      %386 = vdwg.mxu0
      %v387 = vld [vmem:[%s261] sm:$0xff]
      %v388 = vld [vmem:[%s261 + $0x8] sm:$0xff]
      %v389 = vadd.f32 %v381, %v387
      %v390 = vadd.f32 %v383, %v388
      %391 = vst [vmem:[%s271] sm:$0xff] %v389
      %392 = vst [vmem:[%s271 + $0x8] sm:$0xff] %v390
      %s393 = smul.u32 2, %s20
      %p394 = scmp.lt.s32.totalorder %s19, 1
      %s395 = scalar_select %p394, %s19, 1
      %p396 = scmp.lt.s32.totalorder %s393, 1
      %s397 = scalar_select %p396, %s393, 1
      %s398 = smul.addr %s395, 2
      %s399 = sadd.s32 %s397, %s398
      %s400 = smul.addr %s399, 8
      %s401 = scalar_lea.vmem %s4, %s400
      // Predicated region
      $region37: #{sequential_with_t_forward.7} parent=35 // pred_check
        %p402 = pneg %p145
      $region38: #{sequential_with_t_forward.7} parent=35 // pred_check_branch
        %404 = sbr.rel (%p402) target = $region40
      $region39: #{sequential_with_t_forward.7} parent=35 // pred_region
        %s405 = smul.u32 2, %s20
      $region40: #{sequential_with_t_forward.7} parent=35 // pred_fallthru
        _
    $region36: #{sequential_with_t_forward.7} parent=5 // pred_fallthru
      _
    %p406 = scmp.le.s32.totalorder 2, %s10
    // Predicated region
    $region41: #{sequential_with_t_forward.7} parent=5 // pred_check
      %p407 = pneg %p406
    $region42: #{sequential_with_t_forward.7} parent=5 // pred_check_branch
      %409 = sbr.rel (%p407) target = $region44
    $region43: #{sequential_with_t_forward.7} parent=5 // pred_region
      %s410 = ssub.s32 %s10, 2
      // Predicated region
      $region45: #{sequential_with_t_forward.7} parent=43 // pred_check
        %p411 = pneg %p151
      $region46: #{sequential_with_t_forward.7} parent=43 // pred_check_branch
        %413 = sbr.rel (%p411) target = $region48
      $region47: #{sequential_with_t_forward.7} parent=43 // pred_region
        %s414 = smul.u32 2, %s22
        %p415 = scmp.lt.s32.totalorder %s21, 1
        %s416 = scalar_select %p415, %s21, 1
        %p417 = scmp.lt.s32.totalorder %s414, 1
        %s418 = scalar_select %p417, %s414, 1
        %s419 = smul.addr %s416, 2
        %s420 = sadd.s32 %s418, %s419
        %s421 = smul.addr %s420, 8
        %s422 = scalar_lea.vmem %s4, %s421
      $region48: #{sequential_with_t_forward.7} parent=43 // pred_fallthru
        _
    $region44: #{sequential_with_t_forward.7} parent=5 // pred_fallthru
      _
  $region6: #{sequential_with_t_forward.7} parent=0 // loop_footer
    %s14 = sadd.s32 1, %s10
  $region7: #{sequential_with_t_forward.7} parent=0 // loop_footer_branch
    %9 = sbr.rel target = $region3
  $region8: #{sequential_with_t_forward.7} parent=0 // loop_exit
    _

</llo_original>
